<compile_context>
chip_gen: v7x
topology: tpu7x:2x2x1
jax: 0.10.0
libtpu: 0.0.40
codegen_flags: <defaults>
</compile_context>

<pallas_src>
import functools

import jax
import jax.numpy as jnp
from jax.experimental import pallas as pl
from jax.experimental.pallas import tpu as pltpu


# --------------------------------------------------------------------------
# Pallas kernel: encoder -> fused latent head -> reparameterize -> decoder
# --------------------------------------------------------------------------
def cvae_kernel(x_ref, eps_ref, lbl_ref,
                w1x_ref, w1c_ref, b1_ref, w2_ref, b2_ref, w3_ref, b3_ref,
                w4zz_ref, w4c_ref, b4_ref, w5_ref, b5_ref, w6_ref, b6_ref,
                recon_ref, mlv_ref, *, z_dim, y_dim):
    f32, bf16 = jnp.float32, jnp.bfloat16

    def mm(a, w_ref):
        # bf16 x bf16 MXU matmul with f32 accumulation.
        return jnp.dot(a, w_ref[...], preferred_element_type=f32)

    # ---- in-kernel one-hot: one_hot(label) @ W_c == W_c[label] ----
    lbl = lbl_ref[...]                                               # [tb,1] i32
    cls = jax.lax.broadcasted_iota(jnp.int32, (lbl.shape[0], y_dim), 1)
    onehot = jnp.where(cls == lbl, 1.0, 0.0).astype(bf16)            # [tb,10]

    # ---- encoder ----
    h = mm(x_ref[...], w1x_ref) + mm(onehot, w1c_ref) + b1_ref[...]      # fc1
    h = jnp.maximum(h, 0.0).astype(bf16)
    h = jnp.maximum(mm(h, w2_ref) + b2_ref[...], 0.0).astype(bf16)       # fc2
    mlv = mm(h, w3_ref) + b3_ref[...]               # fused [mu | log_var], f32
    mlv_ref[...] = mlv

    # ---- reparameterization (slice-free) ----
    # is_mu = 1 on the mu half, 0 on the log_var half; eps_ref = [0 | eps],
    # so t = [mu | eps * std].
    col = jax.lax.broadcasted_iota(jnp.int32, mlv.shape, 1)
    is_mu = (col < z_dim).astype(f32)
    t = mlv * is_mu + eps_ref[...] * jnp.exp(0.5 * mlv * (1.0 - is_mu))

    # ---- decoder ----
    # w4zz = vstack([W4_z, W4_z]) so t @ w4zz == z @ W4_z (no lane slicing).
    h = mm(t.astype(bf16), w4zz_ref) + mm(onehot, w4c_ref) + b4_ref[...]  # fc4
    h = jnp.maximum(h, 0.0).astype(bf16)
    h = jnp.maximum(mm(h, w5_ref) + b5_ref[...], 0.0).astype(bf16)        # fc5
    out = jax.nn.sigmoid(mm(h, w6_ref) + b6_ref[...])                     # fc6
    recon_ref[...] = out.astype(recon_ref.dtype)


# --------------------------------------------------------------------------
# Wrapper
# --------------------------------------------------------------------------
def _choose_tile_and_pad(b):
    """Pick a batch tile and padded batch size.

    Prefer large tiles (measured 85%+ of the HBM roofline at 512+ rows) and
    guarantee >= 2 grid steps at large B so the v7x megacore can split the
    batch axis; tiny batches collapse to a single sublane-aligned tile.
    """
    for t in (2048, 1024, 512, 256, 128):
        if b >= 2 * t:
            return t, -(-b // t) * t
    tile = max(8, -(-b // 8) * 8)
    return tile, tile


@functools.partial(jax.jit, static_argnames=("z_dim", "recon_dtype"))
def cvae_forward(x, label, eps, params, *, z_dim, recon_dtype=jnp.bfloat16):
    """x: [B, ...] flattened to [B, 784]; label: [B] int32 in [0, 10)."""
    (w1x, w1c, b1, w2, b2, w3, b3, w4zz, w4c, b4, w5, b5, w6, b6) = params

    B = x.shape[0]
    x_dim = w6.shape[1]
    h1 = w1x.shape[1]
    h2 = w2.shape[1]
    y_dim = w1c.shape[0]

    # x.view(-1, 784), shipped as bf16 (the MXU input is bf16 anyway and the
    # kernel is HBM-bound, so this is a free 2x cut of the largest input DMA).
    x = x.reshape(B, x_dim).astype(jnp.bfloat16)
    label2d = label.reshape(B, 1).astype(jnp.int32)
    # eps padded to [B, 2z]: mu half is zero, log_var half carries eps.
    eps_ext = jnp.concatenate(
        [jnp.zeros_like(eps, dtype=jnp.float32), eps.astype(jnp.float32)],
        axis=-1)

    tile_b, pad_b = _choose_tile_and_pad(B)
    if pad_b != B:
        pad = ((0, pad_b - B), (0, 0))
        x = jnp.pad(x, pad)
        label2d = jnp.pad(label2d, pad)
        eps_ext = jnp.pad(eps_ext, pad)
    grid = (pad_b // tile_b,)

    def bspec(cols):       # batch-tiled arrays (pipelined across grid steps)
        return pl.BlockSpec((tile_b, cols), lambda i: (i, 0))

    def wspec(arr):        # weights/biases: VMEM-resident across batch tiles
        return pl.BlockSpec(arr.shape, lambda i: (0, 0))
    # NOTE: weights keep the default double-buffering; pl.Buffered(1) would
    # only reclaim ~0.5 MB of VMEM and the footprint is far below the limit.

    in_specs = [
        bspec(x_dim),          # x (bf16)
        bspec(2 * z_dim),      # eps_ext (f32)
        bspec(1),              # labels (int32)
        wspec(w1x), wspec(w1c), wspec(b1),
        wspec(w2), wspec(b2), wspec(w3), wspec(b3),
        wspec(w4zz), wspec(w4c), wspec(b4),
        wspec(w5), wspec(b5), wspec(w6), wspec(b6),
    ]
    out_specs = (bspec(x_dim), bspec(2 * z_dim))
    out_shape = (
        jax.ShapeDtypeStruct((pad_b, x_dim), recon_dtype),        # recon
        jax.ShapeDtypeStruct((pad_b, 2 * z_dim), jnp.float32),    # [mu|log_var]
    )

    # Advisory cost estimate for XLA scheduling around the custom call.
    flops = 2 * pad_b * (x_dim * h1 + y_dim * h1 + h1 * h2 + h2 * 2 * z_dim
                         + 2 * z_dim * h2 + y_dim * h2 + h2 * h1 + h1 * x_dim)
    bytes_w = sum(int(a.size) * a.dtype.itemsize
                  for a in (w1x, w1c, b1, w2, b2, w3, b3,
                            w4zz, w4c, b4, w5, b5, w6, b6))
    bytes_act = pad_b * (2 * x_dim                                   # x bf16
                         + jnp.dtype(recon_dtype).itemsize * x_dim   # recon
                         + 2 * 4 * (2 * z_dim)                       # eps, mlv
                         + 4)                                        # labels
    cost = pl.CostEstimate(flops=flops,
                           transcendentals=pad_b * (2 * z_dim + x_dim),
                           bytes_accessed=bytes_w + bytes_act)

    recon, mlv = pl.pallas_call(
        functools.partial(cvae_kernel, z_dim=z_dim, y_dim=y_dim),
        out_shape=out_shape,
        grid_spec=pltpu.PrefetchScalarGridSpec(
            num_scalar_prefetch=0,
            grid=grid,
            in_specs=in_specs,
            out_specs=out_specs,
        ),
        compiler_params=pltpu.CompilerParams(
            dimension_semantics=("parallel",),
            # Raised scoped-VMEM limit: the largest tile (2048 rows, bf16
            # x/recon) is ~17 MiB double-buffered; 48 MiB leaves headroom and
            # stays safe on v7x's 64 MiB per-TC VMEM.
            vmem_limit_bytes=48 * 1024 * 1024,
        ),
        cost_estimate=cost,
    )(x, eps_ext, label2d,
      w1x, w1c, b1, w2, b2, w3, b3, w4zz, w4c, b4, w5, b5, w6, b6)

    recon = recon[:B]
    mu = mlv[:B, :z_dim]
    log_var = mlv[:B, z_dim:]
    return recon, mu, log_var


# --------------------------------------------------------------------------
# Parameter init (PyTorch nn.Linear default: U(-1/sqrt(fan_in))) and packing
# into the kernel layout. Weights stored as [in_features, out_features].
# --------------------------------------------------------------------------
def init_torch_params(key, x_dim, y_dim, h1, h2, z_dim):
    def linear(k, fan_in, fan_out):
        kw, kb = jax.random.split(k)
        bound = 1.0 / jnp.sqrt(fan_in)
        w = jax.random.uniform(kw, (fan_in, fan_out), jnp.float32, -bound, bound)
        b = jax.random.uniform(kb, (1, fan_out), jnp.float32, -bound, bound)
        return w, b

    keys = jax.random.split(key, 7)
    return dict(
        fc1=linear(keys[0], x_dim + y_dim, h1),
        fc2=linear(keys[1], h1, h2),
        fc31=linear(keys[2], h2, z_dim),
        fc32=linear(keys[3], h2, z_dim),
        fc4=linear(keys[4], z_dim + y_dim, h2),
        fc5=linear(keys[5], h2, h1),
        fc6=linear(keys[6], h1, x_dim),
    )


def pack_params(p, x_dim, y_dim, z_dim):
    bf16 = jnp.bfloat16
    w1, b1 = p["fc1"]
    w2, b2 = p["fc2"]
    w31, b31 = p["fc31"]
    w32, b32 = p["fc32"]
    w4, b4 = p["fc4"]
    w5, b5 = p["fc5"]
    w6, b6 = p["fc6"]

    w1x = w1[:x_dim].astype(bf16)                            # [784, h1]
    w1c = w1[x_dim:].astype(bf16)                            # [10, h1] class rows
    w3 = jnp.concatenate([w31, w32], axis=1).astype(bf16)    # fused latent head
    b3 = jnp.concatenate([b31, b32], axis=1)
    w4z, w4c = w4[:z_dim], w4[z_dim:]
    w4zz = jnp.concatenate([w4z, w4z], axis=0).astype(bf16)  # slice-free reparam
    return (w1x, w1c, b1, w2.astype(bf16), b2, w3, b3,
            w4zz, w4c.astype(bf16), b4,
            w5.astype(bf16), b5, w6.astype(bf16), b6)


# --------------------------------------------------------------------------
# Pure-JAX reference mirroring the PyTorch forward (one-hot, concat, separate
# heads).  Uses the same bf16-rounded weights as the kernel so the remaining
# mismatch is only the bf16 activation casts / MXU accumulation order.
# --------------------------------------------------------------------------
def reference_forward(x, label, eps, torch_params, z_dim):
    f32 = jnp.float32

    def wq(w):
        return w.astype(jnp.bfloat16).astype(f32)

    p = torch_params
    w1, b1 = p["fc1"]; w2, b2 = p["fc2"]
    w31, b31 = p["fc31"]; w32, b32 = p["fc32"]
    w4, b4 = p["fc4"]; w5, b5 = p["fc5"]; w6, b6 = p["fc6"]

    B = x.shape[0]
    x = x.reshape(B, -1).astype(f32)
    c = jax.nn.one_hot(label, 10, dtype=f32)
    xc = jnp.concatenate([x, c], axis=-1)
    h = jax.nn.relu(xc @ wq(w1) + b1)
    h = jax.nn.relu(h @ wq(w2) + b2)
    mu = h @ wq(w31) + b31
    log_var = h @ wq(w32) + b32
    z = mu + eps * jnp.exp(0.5 * log_var)
    zc = jnp.concatenate([z, c], axis=-1)
    h = jax.nn.relu(zc @ wq(w4) + b4)
    h = jax.nn.relu(h @ wq(w5) + b5)
    return jax.nn.sigmoid(h @ wq(w6) + b6), mu, log_var


if __name__ == "__main__":
    # Hyperparameters fixed by the module: x.view(-1, 784) and one_hot(_, 10).
    X_DIM, Y_DIM = 784, 10
    H1, H2, Z_DIM = 128, 64, 16
    B = 8

    key = jax.random.PRNGKey(0)
    k_param, k_x, k_lbl, k_eps = jax.random.split(key, 4)

    torch_params = init_torch_params(k_param, X_DIM, Y_DIM, H1, H2, Z_DIM)
    params = pack_params(torch_params, X_DIM, Y_DIM, Z_DIM)

    x = jax.random.uniform(k_x, (B, 1, 28, 28), jnp.float32)     # image-like input
    label = jax.random.randint(k_lbl, (B,), 0, 10, jnp.int32)
    # TODO(synk): torch.randn_like noise has no in-kernel equivalent here; the
    # sampling noise is taken as an explicit eps input to keep the kernel pure.
    eps = jax.random.normal(k_eps, (B, Z_DIM), jnp.float32)

    recon, mu, log_var = cvae_forward(x, label, eps, params, z_dim=Z_DIM)
    jax.block_until_ready((recon, mu, log_var))

    # Correctness check vs. PyTorch-structured reference.
    r_ref, mu_ref, lv_ref = reference_forward(x, label, eps, torch_params, Z_DIM)
    assert recon.shape == (B, X_DIM)
    assert mu.shape == (B, Z_DIM) and log_var.shape == (B, Z_DIM)
    r32 = recon.astype(jnp.float32)
    assert jnp.allclose(r32, r_ref, atol=5e-2), float(jnp.max(jnp.abs(r32 - r_ref)))
    assert jnp.allclose(mu, mu_ref, atol=5e-2), float(jnp.max(jnp.abs(mu - mu_ref)))
    assert jnp.allclose(log_var, lv_ref, atol=5e-2), float(jnp.max(jnp.abs(log_var - lv_ref)))

    print("KERNEL_OK")
</pallas_src>

<mosaic_0001>
module attributes {stable_mosaic.version = 11 : i64} {
  func.func @cvae_kernel(%arg0: i32, %arg1: memref<8x784xbf16, #tpu.memory_space<vmem>>, %arg2: memref<8x32xf32, #tpu.memory_space<vmem>>, %arg3: memref<8x1xi32, #tpu.memory_space<vmem>>, %arg4: memref<784x128xbf16, #tpu.memory_space<vmem>>, %arg5: memref<10x128xbf16, #tpu.memory_space<vmem>>, %arg6: memref<1x128xf32, #tpu.memory_space<vmem>>, %arg7: memref<128x64xbf16, #tpu.memory_space<vmem>>, %arg8: memref<1x64xf32, #tpu.memory_space<vmem>>, %arg9: memref<64x32xbf16, #tpu.memory_space<vmem>>, %arg10: memref<1x32xf32, #tpu.memory_space<vmem>>, %arg11: memref<32x64xbf16, #tpu.memory_space<vmem>>, %arg12: memref<10x64xbf16, #tpu.memory_space<vmem>>, %arg13: memref<1x64xf32, #tpu.memory_space<vmem>>, %arg14: memref<64x128xbf16, #tpu.memory_space<vmem>>, %arg15: memref<1x128xf32, #tpu.memory_space<vmem>>, %arg16: memref<128x784xbf16, #tpu.memory_space<vmem>>, %arg17: memref<1x784xf32, #tpu.memory_space<vmem>>, %arg18: memref<8x784xbf16, #tpu.memory_space<vmem>>, %arg19: memref<8x32xf32, #tpu.memory_space<vmem>>) attributes {dimension_semantics = [#tpu.dimension_semantics<parallel>], iteration_bounds = array<i64: 1>, scalar_prefetch = 0 : i64, scratch_operands = 0 : i64, tpu.core_type = #tpu.core_type<tc>, window_params = [{transform_indices = @transform_0, window_bounds = array<i64: 8, 784>}, {transform_indices = @transform_1, window_bounds = array<i64: 8, 32>}, {transform_indices = @transform_2, window_bounds = array<i64: 8, 1>}, {pipeline_mode = #tpu.pipeline_mode<synchronous>, transform_indices = @transform_3, window_bounds = array<i64: 784, 128>}, {pipeline_mode = #tpu.pipeline_mode<synchronous>, transform_indices = @transform_4, window_bounds = array<i64: 10, 128>}, {pipeline_mode = #tpu.pipeline_mode<synchronous>, transform_indices = @transform_5, window_bounds = array<i64: 1, 128>}, {pipeline_mode = #tpu.pipeline_mode<synchronous>, transform_indices = @transform_6, window_bounds = array<i64: 128, 64>}, {pipeline_mode = #tpu.pipeline_mode<synchronous>, transform_indices = @transform_7, window_bounds = array<i64: 1, 64>}, {pipeline_mode = #tpu.pipeline_mode<synchronous>, transform_indices = @transform_8, window_bounds = array<i64: 64, 32>}, {pipeline_mode = #tpu.pipeline_mode<synchronous>, transform_indices = @transform_9, window_bounds = array<i64: 1, 32>}, {pipeline_mode = #tpu.pipeline_mode<synchronous>, transform_indices = @transform_10, window_bounds = array<i64: 32, 64>}, {pipeline_mode = #tpu.pipeline_mode<synchronous>, transform_indices = @transform_11, window_bounds = array<i64: 10, 64>}, {pipeline_mode = #tpu.pipeline_mode<synchronous>, transform_indices = @transform_12, window_bounds = array<i64: 1, 64>}, {pipeline_mode = #tpu.pipeline_mode<synchronous>, transform_indices = @transform_13, window_bounds = array<i64: 64, 128>}, {pipeline_mode = #tpu.pipeline_mode<synchronous>, transform_indices = @transform_14, window_bounds = array<i64: 1, 128>}, {pipeline_mode = #tpu.pipeline_mode<synchronous>, transform_indices = @transform_15, window_bounds = array<i64: 128, 784>}, {pipeline_mode = #tpu.pipeline_mode<synchronous>, transform_indices = @transform_16, window_bounds = array<i64: 1, 784>}, {transform_indices = @transform_17, window_bounds = array<i64: 8, 784>}, {transform_indices = @transform_18, window_bounds = array<i64: 8, 32>}]} {
    %c0 = arith.constant 0 : index
    %c0_0 = arith.constant 0 : index
    %0 = vector.load %arg3[%c0, %c0_0] : memref<8x1xi32, #tpu.memory_space<vmem>>, vector<8x1xi32>
    %1 = tpu.iota {dimensions = array<i32: 1>} : vector<8x10xi32>
    %2 = vector.broadcast %0 : vector<8x1xi32> to vector<8x10xi32>
    %3 = arith.cmpi eq, %1, %2 : vector<8x10xi32>
    %cst = arith.constant 1.000000e+00 : f32
    %cst_1 = arith.constant 0.000000e+00 : f32
    %4 = vector.broadcast %cst : f32 to vector<8x10xf32>
    %5 = vector.broadcast %cst_1 : f32 to vector<8x10xf32>
    %6 = arith.select %3, %4, %5 : vector<8x10xi1>, vector<8x10xf32>
    %7 = arith.truncf %6 : vector<8x10xf32> to vector<8x10xbf16>
    %c0_2 = arith.constant 0 : index
    %c0_3 = arith.constant 0 : index
    %8 = vector.load %arg1[%c0_2, %c0_3] : memref<8x784xbf16, #tpu.memory_space<vmem>>, vector<8x784xbf16>
    %c0_4 = arith.constant 0 : index
    %c0_5 = arith.constant 0 : index
    %9 = vector.load %arg4[%c0_4, %c0_5] : memref<784x128xbf16, #tpu.memory_space<vmem>>, vector<784x128xbf16>
    %cst_6 = arith.constant dense<0.000000e+00> : vector<8x128xf32>
    %10 = tpu.matmul %8, %9, %cst_6 {dimension_numbers = #tpu.dot_dimension_numbers<[1], [0], [0], [1], [0, 0, 1, 1], [], []>} : vector<8x784xbf16>, vector<784x128xbf16>, vector<8x128xf32> -> vector<8x128xf32>
    %c0_7 = arith.constant 0 : index
    %c0_8 = arith.constant 0 : index
    %11 = vector.load %arg5[%c0_7, %c0_8] : memref<10x128xbf16, #tpu.memory_space<vmem>>, vector<10x128xbf16>
    %cst_9 = arith.constant dense<0.000000e+00> : vector<8x128xf32>
    %12 = tpu.matmul %7, %11, %cst_9 {dimension_numbers = #tpu.dot_dimension_numbers<[1], [0], [0], [1], [0, 0, 1, 1], [], []>} : vector<8x10xbf16>, vector<10x128xbf16>, vector<8x128xf32> -> vector<8x128xf32>
    %13 = arith.addf %10, %12 : vector<8x128xf32>
    %c0_10 = arith.constant 0 : index
    %c0_11 = arith.constant 0 : index
    %14 = vector.load %arg6[%c0_10, %c0_11] : memref<1x128xf32, #tpu.memory_space<vmem>>, vector<1x128xf32>
    %15 = vector.broadcast %14 : vector<1x128xf32> to vector<8x128xf32>
    %16 = arith.addf %13, %15 : vector<8x128xf32>
    %cst_12 = arith.constant 0.000000e+00 : f32
    %17 = vector.broadcast %cst_12 : f32 to vector<8x128xf32>
    %18 = arith.maximumf %16, %17 : vector<8x128xf32>
    %19 = arith.truncf %18 : vector<8x128xf32> to vector<8x128xbf16>
    %c0_13 = arith.constant 0 : index
    %c0_14 = arith.constant 0 : index
    %20 = vector.load %arg7[%c0_13, %c0_14] : memref<128x64xbf16, #tpu.memory_space<vmem>>, vector<128x64xbf16>
    %cst_15 = arith.constant dense<0.000000e+00> : vector<8x64xf32>
    %21 = tpu.matmul %19, %20, %cst_15 {dimension_numbers = #tpu.dot_dimension_numbers<[1], [0], [0], [1], [0, 0, 1, 1], [], []>} : vector<8x128xbf16>, vector<128x64xbf16>, vector<8x64xf32> -> vector<8x64xf32>
    %c0_16 = arith.constant 0 : index
    %c0_17 = arith.constant 0 : index
    %22 = vector.load %arg8[%c0_16, %c0_17] : memref<1x64xf32, #tpu.memory_space<vmem>>, vector<1x64xf32>
    %23 = vector.broadcast %22 : vector<1x64xf32> to vector<8x64xf32>
    %24 = arith.addf %21, %23 : vector<8x64xf32>
    %cst_18 = arith.constant 0.000000e+00 : f32
    %25 = vector.broadcast %cst_18 : f32 to vector<8x64xf32>
    %26 = arith.maximumf %24, %25 : vector<8x64xf32>
    %27 = arith.truncf %26 : vector<8x64xf32> to vector<8x64xbf16>
    %c0_19 = arith.constant 0 : index
    %c0_20 = arith.constant 0 : index
    %28 = vector.load %arg9[%c0_19, %c0_20] : memref<64x32xbf16, #tpu.memory_space<vmem>>, vector<64x32xbf16>
    %cst_21 = arith.constant dense<0.000000e+00> : vector<8x32xf32>
    %29 = tpu.matmul %27, %28, %cst_21 {dimension_numbers = #tpu.dot_dimension_numbers<[1], [0], [0], [1], [0, 0, 1, 1], [], []>} : vector<8x64xbf16>, vector<64x32xbf16>, vector<8x32xf32> -> vector<8x32xf32>
    %c0_22 = arith.constant 0 : index
    %c0_23 = arith.constant 0 : index
    %30 = vector.load %arg10[%c0_22, %c0_23] : memref<1x32xf32, #tpu.memory_space<vmem>>, vector<1x32xf32>
    %31 = vector.broadcast %30 : vector<1x32xf32> to vector<8x32xf32>
    %32 = arith.addf %29, %31 : vector<8x32xf32>
    %c0_24 = arith.constant 0 : index
    %c0_25 = arith.constant 0 : index
    %33 = vector.load %arg19[%c0_24, %c0_25] : memref<8x32xf32, #tpu.memory_space<vmem>>, vector<8x32xf32>
    tpu.vector_store %arg19[%c0_24, %c0_25], %32 {strides = array<i32>} : memref<8x32xf32, #tpu.memory_space<vmem>>, vector<8x32xf32>,
    %34 = tpu.iota {dimensions = array<i32: 1>} : vector<8x32xi32>
    %c16_i32 = arith.constant 16 : i32
    %35 = vector.broadcast %c16_i32 : i32 to vector<8x32xi32>
    %36 = arith.cmpi slt, %34, %35 : vector<8x32xi32>
    %37 = arith.extui %36 : vector<8x32xi1> to vector<8x32xi32>
    %38 = arith.sitofp %37 : vector<8x32xi32> to vector<8x32xf32>
    %39 = arith.mulf %32, %38 : vector<8x32xf32>
    %c0_26 = arith.constant 0 : index
    %c0_27 = arith.constant 0 : index
    %40 = vector.load %arg2[%c0_26, %c0_27] : memref<8x32xf32, #tpu.memory_space<vmem>>, vector<8x32xf32>
    %cst_28 = arith.constant 5.000000e-01 : f32
    %41 = vector.broadcast %cst_28 : f32 to vector<8x32xf32>
    %42 = arith.mulf %41, %32 : vector<8x32xf32>
    %cst_29 = arith.constant 1.000000e+00 : f32
    %43 = vector.broadcast %cst_29 : f32 to vector<8x32xf32>
    %44 = arith.subf %43, %38 : vector<8x32xf32>
    %45 = arith.mulf %42, %44 : vector<8x32xf32>
    %46 = math.exp %45 : vector<8x32xf32>
    %47 = arith.mulf %40, %46 : vector<8x32xf32>
    %48 = arith.addf %39, %47 : vector<8x32xf32>
    %49 = arith.truncf %48 : vector<8x32xf32> to vector<8x32xbf16>
    %c0_30 = arith.constant 0 : index
    %c0_31 = arith.constant 0 : index
    %50 = vector.load %arg11[%c0_30, %c0_31] : memref<32x64xbf16, #tpu.memory_space<vmem>>, vector<32x64xbf16>
    %cst_32 = arith.constant dense<0.000000e+00> : vector<8x64xf32>
    %51 = tpu.matmul %49, %50, %cst_32 {dimension_numbers = #tpu.dot_dimension_numbers<[1], [0], [0], [1], [0, 0, 1, 1], [], []>} : vector<8x32xbf16>, vector<32x64xbf16>, vector<8x64xf32> -> vector<8x64xf32>
    %c0_33 = arith.constant 0 : index
    %c0_34 = arith.constant 0 : index
    %52 = vector.load %arg12[%c0_33, %c0_34] : memref<10x64xbf16, #tpu.memory_space<vmem>>, vector<10x64xbf16>
    %cst_35 = arith.constant dense<0.000000e+00> : vector<8x64xf32>
    %53 = tpu.matmul %7, %52, %cst_35 {dimension_numbers = #tpu.dot_dimension_numbers<[1], [0], [0], [1], [0, 0, 1, 1], [], []>} : vector<8x10xbf16>, vector<10x64xbf16>, vector<8x64xf32> -> vector<8x64xf32>
    %54 = arith.addf %51, %53 : vector<8x64xf32>
    %c0_36 = arith.constant 0 : index
    %c0_37 = arith.constant 0 : index
    %55 = vector.load %arg13[%c0_36, %c0_37] : memref<1x64xf32, #tpu.memory_space<vmem>>, vector<1x64xf32>
    %56 = vector.broadcast %55 : vector<1x64xf32> to vector<8x64xf32>
    %57 = arith.addf %54, %56 : vector<8x64xf32>
    %cst_38 = arith.constant 0.000000e+00 : f32
    %58 = vector.broadcast %cst_38 : f32 to vector<8x64xf32>
    %59 = arith.maximumf %57, %58 : vector<8x64xf32>
    %60 = arith.truncf %59 : vector<8x64xf32> to vector<8x64xbf16>
    %c0_39 = arith.constant 0 : index
    %c0_40 = arith.constant 0 : index
    %61 = vector.load %arg14[%c0_39, %c0_40] : memref<64x128xbf16, #tpu.memory_space<vmem>>, vector<64x128xbf16>
    %cst_41 = arith.constant dense<0.000000e+00> : vector<8x128xf32>
    %62 = tpu.matmul %60, %61, %cst_41 {dimension_numbers = #tpu.dot_dimension_numbers<[1], [0], [0], [1], [0, 0, 1, 1], [], []>} : vector<8x64xbf16>, vector<64x128xbf16>, vector<8x128xf32> -> vector<8x128xf32>
    %c0_42 = arith.constant 0 : index
    %c0_43 = arith.constant 0 : index
    %63 = vector.load %arg15[%c0_42, %c0_43] : memref<1x128xf32, #tpu.memory_space<vmem>>, vector<1x128xf32>
    %64 = vector.broadcast %63 : vector<1x128xf32> to vector<8x128xf32>
    %65 = arith.addf %62, %64 : vector<8x128xf32>
    %cst_44 = arith.constant 0.000000e+00 : f32
    %66 = vector.broadcast %cst_44 : f32 to vector<8x128xf32>
    %67 = arith.maximumf %65, %66 : vector<8x128xf32>
    %68 = arith.truncf %67 : vector<8x128xf32> to vector<8x128xbf16>
    %c0_45 = arith.constant 0 : index
    %c0_46 = arith.constant 0 : index
    %69 = vector.load %arg16[%c0_45, %c0_46] : memref<128x784xbf16, #tpu.memory_space<vmem>>, vector<128x784xbf16>
    %cst_47 = arith.constant dense<0.000000e+00> : vector<8x784xf32>
    %70 = tpu.matmul %68, %69, %cst_47 {dimension_numbers = #tpu.dot_dimension_numbers<[1], [0], [0], [1], [0, 0, 1, 1], [], []>} : vector<8x128xbf16>, vector<128x784xbf16>, vector<8x784xf32> -> vector<8x784xf32>
    %c0_48 = arith.constant 0 : index
    %c0_49 = arith.constant 0 : index
    %71 = vector.load %arg17[%c0_48, %c0_49] : memref<1x784xf32, #tpu.memory_space<vmem>>, vector<1x784xf32>
    %72 = vector.broadcast %71 : vector<1x784xf32> to vector<8x784xf32>
    %73 = arith.addf %70, %72 : vector<8x784xf32>
    %74 = arith.negf %73 : vector<8x784xf32>
    %75 = math.exp %74 : vector<8x784xf32>
    %cst_50 = arith.constant 1.000000e+00 : f32
    %76 = vector.broadcast %cst_50 : f32 to vector<8x784xf32>
    %77 = arith.addf %76, %75 : vector<8x784xf32>
    %78 = arith.divf %76, %77 : vector<8x784xf32>
    %79 = arith.truncf %78 : vector<8x784xf32> to vector<8x784xbf16>
    %c0_51 = arith.constant 0 : index
    %c0_52 = arith.constant 0 : index
    %80 = vector.load %arg18[%c0_51, %c0_52] : memref<8x784xbf16, #tpu.memory_space<vmem>>, vector<8x784xbf16>
    tpu.vector_store %arg18[%c0_51, %c0_52], %79 {strides = array<i32>} : memref<8x784xbf16, #tpu.memory_space<vmem>>, vector<8x784xbf16>,
    return
  }
  func.func @transform_0(%arg0: i32) -> (i32, i32) {
    %c0_i32 = arith.constant 0 : i32
    %c0_i32_0 = arith.constant 0 : i32
    return %arg0, %c0_i32 : i32, i32
  }
  func.func @transform_1(%arg0: i32) -> (i32, i32) {
    %c0_i32 = arith.constant 0 : i32
    %c0_i32_0 = arith.constant 0 : i32
    return %arg0, %c0_i32 : i32, i32
  }
  func.func @transform_2(%arg0: i32) -> (i32, i32) {
    %c0_i32 = arith.constant 0 : i32
    %c0_i32_0 = arith.constant 0 : i32
    return %arg0, %c0_i32 : i32, i32
  }
  func.func @transform_3(%arg0: i32) -> (i32, i32) {
    %c0_i32 = arith.constant 0 : i32
    %c0_i32_0 = arith.constant 0 : i32
    %c0_i32_1 = arith.constant 0 : i32
    return %c0_i32, %c0_i32_0 : i32, i32
  }
  func.func @transform_4(%arg0: i32) -> (i32, i32) {
    %c0_i32 = arith.constant 0 : i32
    %c0_i32_0 = arith.constant 0 : i32
    %c0_i32_1 = arith.constant 0 : i32
    return %c0_i32, %c0_i32_0 : i32, i32
  }
  func.func @transform_5(%arg0: i32) -> (i32, i32) {
    %c0_i32 = arith.constant 0 : i32
    %c0_i32_0 = arith.constant 0 : i32
    %c0_i32_1 = arith.constant 0 : i32
    return %c0_i32, %c0_i32_0 : i32, i32
  }
  func.func @transform_6(%arg0: i32) -> (i32, i32) {
    %c0_i32 = arith.constant 0 : i32
    %c0_i32_0 = arith.constant 0 : i32
    %c0_i32_1 = arith.constant 0 : i32
    return %c0_i32, %c0_i32_0 : i32, i32
  }
  func.func @transform_7(%arg0: i32) -> (i32, i32) {
    %c0_i32 = arith.constant 0 : i32
    %c0_i32_0 = arith.constant 0 : i32
    %c0_i32_1 = arith.constant 0 : i32
    return %c0_i32, %c0_i32_0 : i32, i32
  }
  func.func @transform_8(%arg0: i32) -> (i32, i32) {
    %c0_i32 = arith.constant 0 : i32
    %c0_i32_0 = arith.constant 0 : i32
    %c0_i32_1 = arith.constant 0 : i32
    return %c0_i32, %c0_i32_0 : i32, i32
  }
  func.func @transform_9(%arg0: i32) -> (i32, i32) {
    %c0_i32 = arith.constant 0 : i32
    %c0_i32_0 = arith.constant 0 : i32
    %c0_i32_1 = arith.constant 0 : i32
    return %c0_i32, %c0_i32_0 : i32, i32
  }
  func.func @transform_10(%arg0: i32) -> (i32, i32) {
    %c0_i32 = arith.constant 0 : i32
    %c0_i32_0 = arith.constant 0 : i32
    %c0_i32_1 = arith.constant 0 : i32
    return %c0_i32, %c0_i32_0 : i32, i32
  }
  func.func @transform_11(%arg0: i32) -> (i32, i32) {
    %c0_i32 = arith.constant 0 : i32
    %c0_i32_0 = arith.constant 0 : i32
    %c0_i32_1 = arith.constant 0 : i32
    return %c0_i32, %c0_i32_0 : i32, i32
  }
  func.func @transform_12(%arg0: i32) -> (i32, i32) {
    %c0_i32 = arith.constant 0 : i32
    %c0_i32_0 = arith.constant 0 : i32
    %c0_i32_1 = arith.constant 0 : i32
    return %c0_i32, %c0_i32_0 : i32, i32
  }
  func.func @transform_13(%arg0: i32) -> (i32, i32) {
    %c0_i32 = arith.constant 0 : i32
    %c0_i32_0 = arith.constant 0 : i32
    %c0_i32_1 = arith.constant 0 : i32
    return %c0_i32, %c0_i32_0 : i32, i32
  }
  func.func @transform_14(%arg0: i32) -> (i32, i32) {
    %c0_i32 = arith.constant 0 : i32
    %c0_i32_0 = arith.constant 0 : i32
    %c0_i32_1 = arith.constant 0 : i32
    return %c0_i32, %c0_i32_0 : i32, i32
  }
  func.func @transform_15(%arg0: i32) -> (i32, i32) {
    %c0_i32 = arith.constant 0 : i32
    %c0_i32_0 = arith.constant 0 : i32
    %c0_i32_1 = arith.constant 0 : i32
    return %c0_i32, %c0_i32_0 : i32, i32
  }
  func.func @transform_16(%arg0: i32) -> (i32, i32) {
    %c0_i32 = arith.constant 0 : i32
    %c0_i32_0 = arith.constant 0 : i32
    %c0_i32_1 = arith.constant 0 : i32
    return %c0_i32, %c0_i32_0 : i32, i32
  }
  func.func @transform_17(%arg0: i32) -> (i32, i32) {
    %c0_i32 = arith.constant 0 : i32
    %c0_i32_0 = arith.constant 0 : i32
    return %arg0, %c0_i32 : i32, i32
  }
  func.func @transform_18(%arg0: i32) -> (i32, i32) {
    %c0_i32 = arith.constant 0 : i32
    %c0_i32_0 = arith.constant 0 : i32
    return %arg0, %c0_i32 : i32, i32
  }
}

</mosaic_0001>

<llo_original>
// kernel: cvae_forward.1
$region0: #{cvae_forward.1}
  #allocation0 [shape = 'u32[]', space=smem, size = 0x4, offset = 0x4, fixed_abs, tag = 'smem constant byte address 0x4 - core index']
  #allocation1 [shape = 'u32[144,128]{1,0:T(1,128)}', space=vmem, size = 0x12000, scoped, tag = 'internal scratch']
  %s0 = inlined_call_operand.vmem [shape: bf16[8,784], index: 0, kind: input, shape index: {}]
  %s1 = inlined_call_operand.vmem [shape: f32[8,32], index: 1, kind: input, shape index: {}]
  %s2 = inlined_call_operand.vmem [shape: s32[8,1], index: 2, kind: input, shape index: {}]
  %s3 = inlined_call_operand.vmem [shape: bf16[784,128], index: 3, kind: input, shape index: {}]
  %s4 = inlined_call_operand.vmem [shape: bf16[10,128], index: 4, kind: input, shape index: {}]
  %s5 = inlined_call_operand.vmem [shape: f32[1,128], index: 5, kind: input, shape index: {}]
  %s6 = inlined_call_operand.vmem [shape: bf16[128,64], index: 6, kind: input, shape index: {}]
  %s7 = inlined_call_operand.vmem [shape: f32[1,64], index: 7, kind: input, shape index: {}]
  %s8 = inlined_call_operand.vmem [shape: bf16[64,32], index: 8, kind: input, shape index: {}]
  %s9 = inlined_call_operand.vmem [shape: f32[1,32], index: 9, kind: input, shape index: {}]
  %s10 = inlined_call_operand.vmem [shape: bf16[32,64], index: 10, kind: input, shape index: {}]
  %s11 = inlined_call_operand.vmem [shape: bf16[10,64], index: 11, kind: input, shape index: {}]
  %s12 = inlined_call_operand.vmem [shape: f32[1,64], index: 12, kind: input, shape index: {}]
  %s13 = inlined_call_operand.vmem [shape: bf16[64,128], index: 13, kind: input, shape index: {}]
  %s14 = inlined_call_operand.vmem [shape: f32[1,128], index: 14, kind: input, shape index: {}]
  %s15 = inlined_call_operand.vmem [shape: bf16[128,784], index: 15, kind: input, shape index: {}]
  %s16 = inlined_call_operand.vmem [shape: f32[1,784], index: 16, kind: input, shape index: {}]
  %s17 = inlined_call_operand.hbm [shape: bf16[8,784], index: 17, kind: output, shape index: {0}]
  %s18 = inlined_call_operand.vmem [shape: f32[8,32], index: 18, kind: output, shape index: {1}]
  %19 = xla_tuple %s17, %s18
  %s20 = sld [smem:[#allocation0]]
  $region86: #{cvae_forward.1} parent=0
    _
  %s22 = ssub.s32 1, %s20
  %s23 = scalar_select 0, %s22, %s20
  $region1: #{cvae_forward.1} parent=0
    #allocation2 [shape = 'u8[14336]{0}', space=vmem, size = 0x3800, scoped, tag = 'output window, operand 0, single buffered']
    #allocation3 [shape = 's32[1]{0}', space=sflag, size = 0x4, scoped, tag = 'scoped memory for cvae_forward.1']
    %24 = vsyncpa [#allocation3], 0
    // Predicated region
    $region2: #{cvae_forward.1} parent=1 // pred_check
      _
    $region3: #{cvae_forward.1} parent=1 // pred_check_branch
      %26 = sbr.rel (0) target = $region5
    $region4: #{cvae_forward.1} parent=1 // pred_region
      _
    $region5: #{cvae_forward.1} parent=1 // pred_fallthru
      _
    // Predicated region
    $region6: #{cvae_forward.1} parent=1 // pred_check
      _
    $region7: #{cvae_forward.1} parent=1 // pred_check_branch
      %28 = sbr.rel (0) target = $region9
    $region8: #{cvae_forward.1} parent=1 // pred_region
      _
    $region9: #{cvae_forward.1} parent=1 // pred_fallthru
      _
    // Predicated region
    $region10: #{cvae_forward.1} parent=1 // pred_check
      _
    $region11: #{cvae_forward.1} parent=1 // pred_check_branch
      %30 = sbr.rel (0) target = $region13
    $region12: #{cvae_forward.1} parent=1 // pred_region
      _
    $region13: #{cvae_forward.1} parent=1 // pred_fallthru
      _
    // Predicated region
    $region14: #{cvae_forward.1} parent=1 // pred_check
      _
    $region15: #{cvae_forward.1} parent=1 // pred_check_branch
      %32 = sbr.rel (0) target = $region17
    $region16: #{cvae_forward.1} parent=1 // pred_region
      _
    $region17: #{cvae_forward.1} parent=1 // pred_fallthru
      _
    // Predicated region
    $region18: #{cvae_forward.1} parent=1 // pred_check
      _
    $region19: #{cvae_forward.1} parent=1 // pred_check_branch
      %34 = sbr.rel (0) target = $region21
    $region20: #{cvae_forward.1} parent=1 // pred_region
      _
    $region21: #{cvae_forward.1} parent=1 // pred_fallthru
      _
    // Predicated region
    $region22: #{cvae_forward.1} parent=1 // pred_check
      _
    $region23: #{cvae_forward.1} parent=1 // pred_check_branch
      %36 = sbr.rel (0) target = $region25
    $region24: #{cvae_forward.1} parent=1 // pred_region
      _
    $region25: #{cvae_forward.1} parent=1 // pred_fallthru
      _
    // Predicated region
    $region26: #{cvae_forward.1} parent=1 // pred_check
      _
    $region27: #{cvae_forward.1} parent=1 // pred_check_branch
      %38 = sbr.rel (0) target = $region29
    $region28: #{cvae_forward.1} parent=1 // pred_region
      _
    $region29: #{cvae_forward.1} parent=1 // pred_fallthru
      _
    // Predicated region
    $region30: #{cvae_forward.1} parent=1 // pred_check
      _
    $region31: #{cvae_forward.1} parent=1 // pred_check_branch
      %40 = sbr.rel (0) target = $region33
    $region32: #{cvae_forward.1} parent=1 // pred_region
      _
    $region33: #{cvae_forward.1} parent=1 // pred_fallthru
      _
    // Predicated region
    $region34: #{cvae_forward.1} parent=1 // pred_check
      _
    $region35: #{cvae_forward.1} parent=1 // pred_check_branch
      %42 = sbr.rel (0) target = $region37
    $region36: #{cvae_forward.1} parent=1 // pred_region
      _
    $region37: #{cvae_forward.1} parent=1 // pred_fallthru
      _
    // Predicated region
    $region38: #{cvae_forward.1} parent=1 // pred_check
      _
    $region39: #{cvae_forward.1} parent=1 // pred_check_branch
      %44 = sbr.rel (0) target = $region41
    $region40: #{cvae_forward.1} parent=1 // pred_region
      _
    $region41: #{cvae_forward.1} parent=1 // pred_fallthru
      _
    // Predicated region
    $region42: #{cvae_forward.1} parent=1 // pred_check
      _
    $region43: #{cvae_forward.1} parent=1 // pred_check_branch
      %46 = sbr.rel (0) target = $region45
    $region44: #{cvae_forward.1} parent=1 // pred_region
      _
    $region45: #{cvae_forward.1} parent=1 // pred_fallthru
      _
    // Predicated region
    $region46: #{cvae_forward.1} parent=1 // pred_check
      _
    $region47: #{cvae_forward.1} parent=1 // pred_check_branch
      %48 = sbr.rel (0) target = $region49
    $region48: #{cvae_forward.1} parent=1 // pred_region
      _
    $region49: #{cvae_forward.1} parent=1 // pred_fallthru
      _
    // Predicated region
    $region50: #{cvae_forward.1} parent=1 // pred_check
      _
    $region51: #{cvae_forward.1} parent=1 // pred_check_branch
      %50 = sbr.rel (0) target = $region53
    $region52: #{cvae_forward.1} parent=1 // pred_region
      _
    $region53: #{cvae_forward.1} parent=1 // pred_fallthru
      _
    // Predicated region
    $region54: #{cvae_forward.1} parent=1 // pred_check
      _
    $region55: #{cvae_forward.1} parent=1 // pred_check_branch
      %52 = sbr.rel (0) target = $region57
    $region56: #{cvae_forward.1} parent=1 // pred_region
      _
    $region57: #{cvae_forward.1} parent=1 // pred_fallthru
      _
    // Predicated region
    $region58: #{cvae_forward.1} parent=1 // pred_check
      _
    $region59: #{cvae_forward.1} parent=1 // pred_check_branch
      %54 = sbr.rel (0) target = $region61
    $region60: #{cvae_forward.1} parent=1 // pred_region
      _
    $region61: #{cvae_forward.1} parent=1 // pred_fallthru
      _
    // Predicated region
    $region62: #{cvae_forward.1} parent=1 // pred_check
      _
    $region63: #{cvae_forward.1} parent=1 // pred_check_branch
      %56 = sbr.rel (0) target = $region65
    $region64: #{cvae_forward.1} parent=1 // pred_region
      _
    $region65: #{cvae_forward.1} parent=1 // pred_fallthru
      _
    // Predicated region
    $region66: #{cvae_forward.1} parent=1 // pred_check
      _
    $region67: #{cvae_forward.1} parent=1 // pred_check_branch
      %58 = sbr.rel (0) target = $region69
    $region68: #{cvae_forward.1} parent=1 // pred_region
      _
    $region69: #{cvae_forward.1} parent=1 // pred_fallthru
      _
    %v60 = vld [vmem:[%s2] sm:$0xff]
    %v61 = vlaneseq
    %v62 = vand.u32 %v61, 127
    %63 = vset.pattern.permute.xlu0 0
    %64 = vperm.xlu0 %63, %v60
    %v65 = vpop.permute.xlu0 %64
    %vm66 = vcmp.eq.s32.totalorder %v62, %v65
    %v67 = vsel %vm66, 1.0, 0.0
    %v68 = vpack.c.bf16 %v67, %v67
    %v69 = vld [vmem:[%s0] sm:$0xff]
    %v70 = vld [vmem:[%s0 + $0x8] sm:$0xff]
    %v71 = vld [vmem:[%s0 + $0x10] sm:$0xff]
    %v72 = vld [vmem:[%s0 + $0x18] sm:$0xf]
    %v73 = vld [vmem:[%s3] sm:$0xf]
    %v74 = vld [vmem:[%s3 + $0x4] sm:$0xf]
    %v75 = vld [vmem:[%s3 + $0x8] sm:$0xf]
    %v76 = vld [vmem:[%s3 + $0xc] sm:$0xf]
    %v77 = vld [vmem:[%s3 + $0x10] sm:$0xf]
    %v78 = vld [vmem:[%s3 + $0x14] sm:$0xf]
    %v79 = vld [vmem:[%s3 + $0x18] sm:$0xf]
    %v80 = vld [vmem:[%s3 + $0x1c] sm:$0xf]
    %v81 = vld [vmem:[%s3 + $0x20] sm:$0xf]
    %v82 = vld [vmem:[%s3 + $0x24] sm:$0xf]
    %v83 = vld [vmem:[%s3 + $0x28] sm:$0xf]
    %v84 = vld [vmem:[%s3 + $0x2c] sm:$0xf]
    %v85 = vld [vmem:[%s3 + $0x30] sm:$0xf]
    %v86 = vld [vmem:[%s3 + $0x34] sm:$0xf]
    %v87 = vld [vmem:[%s3 + $0x38] sm:$0xf]
    %v88 = vld [vmem:[%s3 + $0x3c] sm:$0xf]
    %v89 = vld [vmem:[%s3 + $0x40] sm:$0xf]
    %v90 = vld [vmem:[%s3 + $0x44] sm:$0xf]
    %v91 = vld [vmem:[%s3 + $0x48] sm:$0xf]
    %v92 = vld [vmem:[%s3 + $0x4c] sm:$0xf]
    %v93 = vld [vmem:[%s3 + $0x50] sm:$0xf]
    %v94 = vld [vmem:[%s3 + $0x54] sm:$0xf]
    %v95 = vld [vmem:[%s3 + $0x58] sm:$0xf]
    %v96 = vld [vmem:[%s3 + $0x5c] sm:$0xf]
    %v97 = vld [vmem:[%s3 + $0x60] sm:$0xf]
    %v98 = vld [vmem:[%s3 + $0x64] sm:$0xf]
    %v99 = vld [vmem:[%s3 + $0x68] sm:$0xf]
    %v100 = vld [vmem:[%s3 + $0x6c] sm:$0xf]
    %v101 = vld [vmem:[%s3 + $0x70] sm:$0xf]
    %v102 = vld [vmem:[%s3 + $0x74] sm:$0xf]
    %v103 = vld [vmem:[%s3 + $0x78] sm:$0xf]
    %v104 = vld [vmem:[%s3 + $0x7c] sm:$0xf]
    %v105 = vld [vmem:[%s3 + $0x80] sm:$0xf]
    %v106 = vld [vmem:[%s3 + $0x84] sm:$0xf]
    %v107 = vld [vmem:[%s3 + $0x88] sm:$0xf]
    %v108 = vld [vmem:[%s3 + $0x8c] sm:$0xf]
    %v109 = vld [vmem:[%s3 + $0x90] sm:$0xf]
    %v110 = vld [vmem:[%s3 + $0x94] sm:$0xf]
    %v111 = vld [vmem:[%s3 + $0x98] sm:$0xf]
    %v112 = vld [vmem:[%s3 + $0x9c] sm:$0xf]
    %v113 = vld [vmem:[%s3 + $0xa0] sm:$0xf]
    %v114 = vld [vmem:[%s3 + $0xa4] sm:$0xf]
    %v115 = vld [vmem:[%s3 + $0xa8] sm:$0xf]
    %v116 = vld [vmem:[%s3 + $0xac] sm:$0xf]
    %v117 = vld [vmem:[%s3 + $0xb0] sm:$0xf]
    %v118 = vld [vmem:[%s3 + $0xb4] sm:$0xf]
    %v119 = vld [vmem:[%s3 + $0xb8] sm:$0xf]
    %v120 = vld [vmem:[%s3 + $0xbc] sm:$0xf]
    %v121 = vld [vmem:[%s3 + $0xc0] sm:$0xf]
    %v122 = vld [vmem:[%s3 + $0xc4] sm:$0xf]
    %v123 = vld [vmem:[%s3 + $0xc8] sm:$0xf]
    %v124 = vld [vmem:[%s3 + $0xcc] sm:$0xf]
    %v125 = vld [vmem:[%s3 + $0xd0] sm:$0xf]
    %v126 = vld [vmem:[%s3 + $0xd4] sm:$0xf]
    %v127 = vld [vmem:[%s3 + $0xd8] sm:$0xf]
    %v128 = vld [vmem:[%s3 + $0xdc] sm:$0xf]
    %v129 = vld [vmem:[%s3 + $0xe0] sm:$0xf]
    %v130 = vld [vmem:[%s3 + $0xe4] sm:$0xf]
    %v131 = vld [vmem:[%s3 + $0xe8] sm:$0xf]
    %v132 = vld [vmem:[%s3 + $0xec] sm:$0xf]
    %v133 = vld [vmem:[%s3 + $0xf0] sm:$0xf]
    %v134 = vld [vmem:[%s3 + $0xf4] sm:$0xf]
    %v135 = vld [vmem:[%s3 + $0xf8] sm:$0xf]
    %v136 = vld [vmem:[%s3 + $0xfc] sm:$0xf]
    %v137 = vld [vmem:[%s3 + $0x100] sm:$0xf]
    %v138 = vld [vmem:[%s3 + $0x104] sm:$0xf]
    %v139 = vld [vmem:[%s3 + $0x108] sm:$0xf]
    %v140 = vld [vmem:[%s3 + $0x10c] sm:$0xf]
    %v141 = vld [vmem:[%s3 + $0x110] sm:$0xf]
    %v142 = vld [vmem:[%s3 + $0x114] sm:$0xf]
    %v143 = vld [vmem:[%s3 + $0x118] sm:$0xf]
    %v144 = vld [vmem:[%s3 + $0x11c] sm:$0xf]
    %v145 = vld [vmem:[%s3 + $0x120] sm:$0xf]
    %v146 = vld [vmem:[%s3 + $0x124] sm:$0xf]
    %v147 = vld [vmem:[%s3 + $0x128] sm:$0xf]
    %v148 = vld [vmem:[%s3 + $0x12c] sm:$0xf]
    %v149 = vld [vmem:[%s3 + $0x130] sm:$0xf]
    %v150 = vld [vmem:[%s3 + $0x134] sm:$0xf]
    %v151 = vld [vmem:[%s3 + $0x138] sm:$0xf]
    %v152 = vld [vmem:[%s3 + $0x13c] sm:$0xf]
    %v153 = vld [vmem:[%s3 + $0x140] sm:$0xf]
    %v154 = vld [vmem:[%s3 + $0x144] sm:$0xf]
    %v155 = vld [vmem:[%s3 + $0x148] sm:$0xf]
    %v156 = vld [vmem:[%s3 + $0x14c] sm:$0xf]
    %v157 = vld [vmem:[%s3 + $0x150] sm:$0xf]
    %v158 = vld [vmem:[%s3 + $0x154] sm:$0xf]
    %v159 = vld [vmem:[%s3 + $0x158] sm:$0xf]
    %v160 = vld [vmem:[%s3 + $0x15c] sm:$0xf]
    %v161 = vld [vmem:[%s3 + $0x160] sm:$0xf]
    %v162 = vld [vmem:[%s3 + $0x164] sm:$0xf]
    %v163 = vld [vmem:[%s3 + $0x168] sm:$0xf]
    %v164 = vld [vmem:[%s3 + $0x16c] sm:$0xf]
    %v165 = vld [vmem:[%s3 + $0x170] sm:$0xf]
    %v166 = vld [vmem:[%s3 + $0x174] sm:$0xf]
    %v167 = vld [vmem:[%s3 + $0x178] sm:$0xf]
    %v168 = vld [vmem:[%s3 + $0x17c] sm:$0xf]
    %v169 = vld [vmem:[%s3 + $0x180] sm:$0xf]
    %v170 = vld [vmem:[%s3 + $0x184] sm:$0xf]
    %v171 = vld [vmem:[%s4] sm:$0xf]
    %v172 = vld [vmem:[%s4 + $0x4] sm:$0x1]
    %v175 = vunpack.c.l.b16 %v171
    %v176 = vunpack.c.l.b16 %v172
    %v177 = vpack.c.b16 %v176, %v175
    %vm178 = vcmask 80896
    %v180 = vsel %vm178, %v68, 0
    %vm182 = vcmask 1044480
    %v184 = vsel %vm182, %v177, 0
    %186 = vmatprep.subr.bf16.mxu0 0
    %187 = vmatpush1.bf16.msra.mxu0 %v184
    %188 = vmatprep.subr.bf16.mxu0 0
    %189 = vmatpush1.bf16.msra.mxu0 0
    %190 = vmatprep.subr.bf16.mxu0 0
    %191 = vmatpush1.bf16.msra.mxu0 0
    %192 = vmatprep.subr.bf16.mxu0 0
    %193 = vmatpush1.bf16.msra.mxu0 0
    %194 = vmatprep.subr.bf16.mxu0 0
    %195 = vmatpush1.bf16.msra.mxu0 0
    %196 = vmatprep.subr.bf16.mxu0 0
    %197 = vmatpush1.bf16.msra.mxu0 0
    %198 = vmatprep.subr.bf16.mxu0 0
    %199 = vmatpush1.bf16.msra.mxu0 0
    %200 = vmatprep.subr.bf16.mxu0 0
    %201 = vmatpush1.bf16.msra.mxu0 0
    %202 = vmatprep.subr.bf16.mxu0 0
    %203 = vmatpush1.bf16.msra.mxu0 0
    %204 = vmatprep.subr.bf16.mxu0 0
    %205 = vmatpush1.bf16.msra.mxu0 0
    %206 = vmatprep.subr.bf16.mxu0 0
    %207 = vmatpush1.bf16.msra.mxu0 0
    %208 = vmatprep.subr.bf16.mxu0 0
    %209 = vmatpush1.bf16.msra.mxu0 0
    %210 = vmatprep.subr.bf16.mxu0 0
    %211 = vmatpush1.bf16.msra.mxu0 0
    %212 = vmatprep.subr.bf16.mxu0 0
    %213 = vmatpush1.bf16.msra.mxu0 0
    %214 = vmatprep.subr.bf16.mxu0 0
    %215 = vmatpush1.bf16.msra.mxu0 0
    %216 = vmatprep.subr.bf16.mxu0 0
    %217 = vmatpush1.bf16.msra.mxu0 0
    %218 = vmatprep.mubr.bf16.mxu0 0
    %219 = vmatmul.mubr.bf16.gmra.mrb[0].mxu0 %v180
    %v220 = vpop.f32.mrb[0].mxu0
    %v221 = vadd.f32 0.0, %v220
    %v222 = vpop.f32.mrb[0].mxu0
    %v223 = vpop.f32.mrb[0].mxu0
    %v224 = vpop.f32.mrb[0].mxu0
    %225 = vdwg.mxu0
    %v230 = vunpack.c.l.b16 %v69
    %v231 = vunpack.c.h.b16 %v69
    %v232 = vunpack.c.l.b16 %v70
    %v233 = vunpack.c.h.b16 %v70
    %v234 = vunpack.c.l.b16 %v71
    %v235 = vunpack.c.h.b16 %v71
    %v236 = vunpack.c.l.b16 %v72
    %v237 = vpack.c.b16 %v230, %v230
    %v238 = vpack.c.b16 %v231, %v231
    %v239 = vpack.c.b16 %v232, %v232
    %v240 = vpack.c.b16 %v233, %v233
    %v241 = vpack.c.b16 %v234, %v234
    %v242 = vpack.c.b16 %v235, %v235
    %v243 = vpack.c.b16 %v236, %v236
    %v348 = vunpack.c.l.b16 %v73
    %v349 = vunpack.c.l.b16 %v74
    %v350 = vunpack.c.l.b16 %v75
    %v351 = vunpack.c.l.b16 %v76
    %v352 = vunpack.c.l.b16 %v77
    %v353 = vunpack.c.l.b16 %v78
    %v354 = vunpack.c.l.b16 %v79
    %v355 = vunpack.c.l.b16 %v80
    %v356 = vunpack.c.l.b16 %v81
    %v357 = vunpack.c.l.b16 %v82
    %v358 = vunpack.c.l.b16 %v83
    %v359 = vunpack.c.l.b16 %v84
    %v360 = vunpack.c.l.b16 %v85
    %v361 = vunpack.c.l.b16 %v86
    %v362 = vunpack.c.l.b16 %v87
    %v363 = vunpack.c.l.b16 %v88
    %v364 = vunpack.c.l.b16 %v89
    %v365 = vunpack.c.l.b16 %v90
    %v366 = vunpack.c.l.b16 %v91
    %v367 = vunpack.c.l.b16 %v92
    %v368 = vunpack.c.l.b16 %v93
    %v369 = vunpack.c.l.b16 %v94
    %v370 = vunpack.c.l.b16 %v95
    %v371 = vunpack.c.l.b16 %v96
    %v372 = vunpack.c.l.b16 %v97
    %v373 = vunpack.c.l.b16 %v98
    %v374 = vunpack.c.l.b16 %v99
    %v375 = vunpack.c.l.b16 %v100
    %v376 = vunpack.c.l.b16 %v101
    %v377 = vunpack.c.l.b16 %v102
    %v378 = vunpack.c.l.b16 %v103
    %v379 = vunpack.c.l.b16 %v104
    %v380 = vunpack.c.l.b16 %v105
    %v381 = vunpack.c.l.b16 %v106
    %v382 = vunpack.c.l.b16 %v107
    %v383 = vunpack.c.l.b16 %v108
    %v384 = vunpack.c.l.b16 %v109
    %v385 = vunpack.c.l.b16 %v110
    %v386 = vunpack.c.l.b16 %v111
    %v387 = vunpack.c.l.b16 %v112
    %v388 = vunpack.c.l.b16 %v113
    %v389 = vunpack.c.l.b16 %v114
    %v390 = vunpack.c.l.b16 %v115
    %v391 = vunpack.c.l.b16 %v116
    %v392 = vunpack.c.l.b16 %v117
    %v393 = vunpack.c.l.b16 %v118
    %v394 = vunpack.c.l.b16 %v119
    %v395 = vunpack.c.l.b16 %v120
    %v396 = vunpack.c.l.b16 %v121
    %v397 = vunpack.c.l.b16 %v122
    %v398 = vunpack.c.l.b16 %v123
    %v399 = vunpack.c.l.b16 %v124
    %v400 = vunpack.c.l.b16 %v125
    %v401 = vunpack.c.l.b16 %v126
    %v402 = vunpack.c.l.b16 %v127
    %v403 = vunpack.c.l.b16 %v128
    %v404 = vunpack.c.l.b16 %v129
    %v405 = vunpack.c.l.b16 %v130
    %v406 = vunpack.c.l.b16 %v131
    %v407 = vunpack.c.l.b16 %v132
    %v408 = vunpack.c.l.b16 %v133
    %v409 = vunpack.c.l.b16 %v134
    %v410 = vunpack.c.l.b16 %v135
    %v411 = vunpack.c.l.b16 %v136
    %v412 = vunpack.c.l.b16 %v137
    %v413 = vunpack.c.l.b16 %v138
    %v414 = vunpack.c.l.b16 %v139
    %v415 = vunpack.c.l.b16 %v140
    %v416 = vunpack.c.l.b16 %v141
    %v417 = vunpack.c.l.b16 %v142
    %v418 = vunpack.c.l.b16 %v143
    %v419 = vunpack.c.l.b16 %v144
    %v420 = vunpack.c.l.b16 %v145
    %v421 = vunpack.c.l.b16 %v146
    %v422 = vunpack.c.l.b16 %v147
    %v423 = vunpack.c.l.b16 %v148
    %v424 = vunpack.c.l.b16 %v149
    %v425 = vunpack.c.l.b16 %v150
    %v426 = vunpack.c.l.b16 %v151
    %v427 = vunpack.c.l.b16 %v152
    %v428 = vunpack.c.l.b16 %v153
    %v429 = vunpack.c.l.b16 %v154
    %v430 = vunpack.c.l.b16 %v155
    %v431 = vunpack.c.l.b16 %v156
    %v432 = vunpack.c.l.b16 %v157
    %v433 = vunpack.c.l.b16 %v158
    %v434 = vunpack.c.l.b16 %v159
    %v435 = vunpack.c.l.b16 %v160
    %v436 = vunpack.c.l.b16 %v161
    %v437 = vunpack.c.l.b16 %v162
    %v438 = vunpack.c.l.b16 %v163
    %v439 = vunpack.c.l.b16 %v164
    %v440 = vunpack.c.l.b16 %v165
    %v441 = vunpack.c.l.b16 %v166
    %v442 = vunpack.c.l.b16 %v167
    %v443 = vunpack.c.l.b16 %v168
    %v444 = vunpack.c.l.b16 %v169
    %v445 = vunpack.c.l.b16 %v170
    %v446 = vpack.c.b16 %v349, %v348
    %v447 = vpack.c.b16 %v351, %v350
    %v448 = vpack.c.b16 %v353, %v352
    %v449 = vpack.c.b16 %v355, %v354
    %v450 = vpack.c.b16 %v357, %v356
    %v451 = vpack.c.b16 %v359, %v358
    %v452 = vpack.c.b16 %v361, %v360
    %v453 = vpack.c.b16 %v363, %v362
    %v454 = vpack.c.b16 %v365, %v364
    %v455 = vpack.c.b16 %v367, %v366
    %v456 = vpack.c.b16 %v369, %v368
    %v457 = vpack.c.b16 %v371, %v370
    %v458 = vpack.c.b16 %v373, %v372
    %v459 = vpack.c.b16 %v375, %v374
    %v460 = vpack.c.b16 %v377, %v376
    %v461 = vpack.c.b16 %v379, %v378
    %v462 = vpack.c.b16 %v381, %v380
    %v463 = vpack.c.b16 %v383, %v382
    %v464 = vpack.c.b16 %v385, %v384
    %v465 = vpack.c.b16 %v387, %v386
    %v466 = vpack.c.b16 %v389, %v388
    %v467 = vpack.c.b16 %v391, %v390
    %v468 = vpack.c.b16 %v393, %v392
    %v469 = vpack.c.b16 %v395, %v394
    %v470 = vpack.c.b16 %v397, %v396
    %v471 = vpack.c.b16 %v399, %v398
    %v472 = vpack.c.b16 %v401, %v400
    %v473 = vpack.c.b16 %v403, %v402
    %v474 = vpack.c.b16 %v405, %v404
    %v475 = vpack.c.b16 %v407, %v406
    %v476 = vpack.c.b16 %v409, %v408
    %v477 = vpack.c.b16 %v411, %v410
    %v478 = vpack.c.b16 %v413, %v412
    %v479 = vpack.c.b16 %v415, %v414
    %v480 = vpack.c.b16 %v417, %v416
    %v481 = vpack.c.b16 %v419, %v418
    %v482 = vpack.c.b16 %v421, %v420
    %v483 = vpack.c.b16 %v423, %v422
    %v484 = vpack.c.b16 %v425, %v424
    %v485 = vpack.c.b16 %v427, %v426
    %v486 = vpack.c.b16 %v429, %v428
    %v487 = vpack.c.b16 %v431, %v430
    %v488 = vpack.c.b16 %v433, %v432
    %v489 = vpack.c.b16 %v435, %v434
    %v490 = vpack.c.b16 %v437, %v436
    %v491 = vpack.c.b16 %v439, %v438
    %v492 = vpack.c.b16 %v441, %v440
    %v493 = vpack.c.b16 %v443, %v442
    %v494 = vpack.c.b16 %v445, %v444
    %vm544 = vcmask 130048
    %v546 = vsel %vm544, %v243, 0
    %548 = vmatprep.subr.bf16.mxu0 0
    %549 = vmatpush1.bf16.msra.mxu0 %v446
    %550 = vmatprep.subr.bf16.mxu0 0
    %551 = vmatpush1.bf16.msra.mxu0 %v447
    %552 = vmatprep.subr.bf16.mxu0 0
    %553 = vmatpush1.bf16.msra.mxu0 %v448
    %554 = vmatprep.subr.bf16.mxu0 0
    %555 = vmatpush1.bf16.msra.mxu0 %v449
    %556 = vmatprep.subr.bf16.mxu0 0
    %557 = vmatpush1.bf16.msra.mxu0 %v450
    %558 = vmatprep.subr.bf16.mxu0 0
    %559 = vmatpush1.bf16.msra.mxu0 %v451
    %560 = vmatprep.subr.bf16.mxu0 0
    %561 = vmatpush1.bf16.msra.mxu0 %v452
    %562 = vmatprep.subr.bf16.mxu0 0
    %563 = vmatpush1.bf16.msra.mxu0 %v453
    %564 = vmatprep.subr.bf16.mxu0 0
    %565 = vmatpush1.bf16.msra.mxu0 %v454
    %566 = vmatprep.subr.bf16.mxu0 0
    %567 = vmatpush1.bf16.msra.mxu0 %v455
    %568 = vmatprep.subr.bf16.mxu0 0
    %569 = vmatpush1.bf16.msra.mxu0 %v456
    %570 = vmatprep.subr.bf16.mxu0 0
    %571 = vmatpush1.bf16.msra.mxu0 %v457
    %572 = vmatprep.subr.bf16.mxu0 0
    %573 = vmatpush1.bf16.msra.mxu0 %v458
    %574 = vmatprep.subr.bf16.mxu0 0
    %575 = vmatpush1.bf16.msra.mxu0 %v459
    %576 = vmatprep.subr.bf16.mxu0 0
    %577 = vmatpush1.bf16.msra.mxu0 %v460
    %578 = vmatprep.subr.bf16.mxu0 0
    %579 = vmatpush1.bf16.msra.mxu0 %v461
    %580 = vmatprep.mubr.bf16.mxu0 %v238
    %581 = vmatmul.mubr.bf16.gmra.mrb[0].mxu0 %v237
    %v582 = vpop.f32.mrb[0].mxu0
    %v583 = vadd.f32 %v221, %v582
    %v584 = vpop.f32.mrb[0].mxu0
    %v585 = vpop.f32.mrb[0].mxu0
    %v586 = vpop.f32.mrb[0].mxu0
    %587 = vdwg.mxu0
    %588 = vmatprep.subr.bf16.mxu0 0
    %589 = vmatpush1.bf16.msra.mxu0 %v462
    %590 = vmatprep.subr.bf16.mxu0 0
    %591 = vmatpush1.bf16.msra.mxu0 %v463
    %592 = vmatprep.subr.bf16.mxu0 0
    %593 = vmatpush1.bf16.msra.mxu0 %v464
    %594 = vmatprep.subr.bf16.mxu0 0
    %595 = vmatpush1.bf16.msra.mxu0 %v465
    %596 = vmatprep.subr.bf16.mxu0 0
    %597 = vmatpush1.bf16.msra.mxu0 %v466
    %598 = vmatprep.subr.bf16.mxu0 0
    %599 = vmatpush1.bf16.msra.mxu0 %v467
    %600 = vmatprep.subr.bf16.mxu0 0
    %601 = vmatpush1.bf16.msra.mxu0 %v468
    %602 = vmatprep.subr.bf16.mxu0 0
    %603 = vmatpush1.bf16.msra.mxu0 %v469
    %604 = vmatprep.subr.bf16.mxu0 0
    %605 = vmatpush1.bf16.msra.mxu0 %v470
    %606 = vmatprep.subr.bf16.mxu0 0
    %607 = vmatpush1.bf16.msra.mxu0 %v471
    %608 = vmatprep.subr.bf16.mxu0 0
    %609 = vmatpush1.bf16.msra.mxu0 %v472
    %610 = vmatprep.subr.bf16.mxu0 0
    %611 = vmatpush1.bf16.msra.mxu0 %v473
    %612 = vmatprep.subr.bf16.mxu0 0
    %613 = vmatpush1.bf16.msra.mxu0 %v474
    %614 = vmatprep.subr.bf16.mxu0 0
    %615 = vmatpush1.bf16.msra.mxu0 %v475
    %616 = vmatprep.subr.bf16.mxu0 0
    %617 = vmatpush1.bf16.msra.mxu0 %v476
    %618 = vmatprep.subr.bf16.mxu0 0
    %619 = vmatpush1.bf16.msra.mxu0 %v477
    %620 = vmatprep.mubr.bf16.mxu0 %v240
    %621 = vmatmul.mubr.bf16.gmra.mrb[0].mxu0 %v239
    %v622 = vpop.f32.mrb[0].mxu0
    %v623 = vadd.f32 %v583, %v622
    %v624 = vpop.f32.mrb[0].mxu0
    %v625 = vpop.f32.mrb[0].mxu0
    %v626 = vpop.f32.mrb[0].mxu0
    %627 = vdwg.mxu0
    %628 = vmatprep.subr.bf16.mxu0 0
    %629 = vmatpush1.bf16.msra.mxu0 %v478
    %630 = vmatprep.subr.bf16.mxu0 0
    %631 = vmatpush1.bf16.msra.mxu0 %v479
    %632 = vmatprep.subr.bf16.mxu0 0
    %633 = vmatpush1.bf16.msra.mxu0 %v480
    %634 = vmatprep.subr.bf16.mxu0 0
    %635 = vmatpush1.bf16.msra.mxu0 %v481
    %636 = vmatprep.subr.bf16.mxu0 0
    %637 = vmatpush1.bf16.msra.mxu0 %v482
    %638 = vmatprep.subr.bf16.mxu0 0
    %639 = vmatpush1.bf16.msra.mxu0 %v483
    %640 = vmatprep.subr.bf16.mxu0 0
    %641 = vmatpush1.bf16.msra.mxu0 %v484
    %642 = vmatprep.subr.bf16.mxu0 0
    %643 = vmatpush1.bf16.msra.mxu0 %v485
    %644 = vmatprep.subr.bf16.mxu0 0
    %645 = vmatpush1.bf16.msra.mxu0 %v486
    %646 = vmatprep.subr.bf16.mxu0 0
    %647 = vmatpush1.bf16.msra.mxu0 %v487
    %648 = vmatprep.subr.bf16.mxu0 0
    %649 = vmatpush1.bf16.msra.mxu0 %v488
    %650 = vmatprep.subr.bf16.mxu0 0
    %651 = vmatpush1.bf16.msra.mxu0 %v489
    %652 = vmatprep.subr.bf16.mxu0 0
    %653 = vmatpush1.bf16.msra.mxu0 %v490
    %654 = vmatprep.subr.bf16.mxu0 0
    %655 = vmatpush1.bf16.msra.mxu0 %v491
    %656 = vmatprep.subr.bf16.mxu0 0
    %657 = vmatpush1.bf16.msra.mxu0 %v492
    %658 = vmatprep.subr.bf16.mxu0 0
    %659 = vmatpush1.bf16.msra.mxu0 %v493
    %660 = vmatprep.mubr.bf16.mxu0 %v242
    %661 = vmatmul.mubr.bf16.gmra.mrb[0].mxu0 %v241
    %v662 = vpop.f32.mrb[0].mxu0
    %v663 = vadd.f32 %v623, %v662
    %v664 = vpop.f32.mrb[0].mxu0
    %v665 = vpop.f32.mrb[0].mxu0
    %v666 = vpop.f32.mrb[0].mxu0
    %667 = vdwg.mxu0
    %668 = vmatprep.subr.bf16.mxu0 0
    %669 = vmatpush1.bf16.msra.mxu0 %v494
    %670 = vmatprep.subr.bf16.mxu0 0
    %671 = vmatpush1.bf16.msra.mxu0 0
    %672 = vmatprep.subr.bf16.mxu0 0
    %673 = vmatpush1.bf16.msra.mxu0 0
    %674 = vmatprep.subr.bf16.mxu0 0
    %675 = vmatpush1.bf16.msra.mxu0 0
    %676 = vmatprep.subr.bf16.mxu0 0
    %677 = vmatpush1.bf16.msra.mxu0 0
    %678 = vmatprep.subr.bf16.mxu0 0
    %679 = vmatpush1.bf16.msra.mxu0 0
    %680 = vmatprep.subr.bf16.mxu0 0
    %681 = vmatpush1.bf16.msra.mxu0 0
    %682 = vmatprep.subr.bf16.mxu0 0
    %683 = vmatpush1.bf16.msra.mxu0 0
    %684 = vmatprep.subr.bf16.mxu0 0
    %685 = vmatpush1.bf16.msra.mxu0 0
    %686 = vmatprep.subr.bf16.mxu0 0
    %687 = vmatpush1.bf16.msra.mxu0 0
    %688 = vmatprep.subr.bf16.mxu0 0
    %689 = vmatpush1.bf16.msra.mxu0 0
    %690 = vmatprep.subr.bf16.mxu0 0
    %691 = vmatpush1.bf16.msra.mxu0 0
    %692 = vmatprep.subr.bf16.mxu0 0
    %693 = vmatpush1.bf16.msra.mxu0 0
    %694 = vmatprep.subr.bf16.mxu0 0
    %695 = vmatpush1.bf16.msra.mxu0 0
    %696 = vmatprep.subr.bf16.mxu0 0
    %697 = vmatpush1.bf16.msra.mxu0 0
    %698 = vmatprep.subr.bf16.mxu0 0
    %699 = vmatpush1.bf16.msra.mxu0 0
    %700 = vmatprep.mubr.bf16.mxu0 0
    %701 = vmatmul.mubr.bf16.gmra.mrb[0].mxu0 %v546
    %v702 = vpop.f32.mrb[0].mxu0
    %v703 = vadd.f32 %v663, %v702
    %v704 = vpop.f32.mrb[0].mxu0
    %v705 = vpop.f32.mrb[0].mxu0
    %v706 = vpop.f32.mrb[0].mxu0
    %707 = vdwg.mxu0
    %v708 = vld [vmem:[%s5] sm:$0x1]
    %v710 = vlaneseq
    %v711 = vshrl.u32 %v710, 7
    %v712 = vsub.s32 0, %v711
    %v713 = vrot.slane %v708, %v712
    %v715 = vadd.f32 %v703, %v713
    %v716 = vmax.f32 %v715, 0.0
    %v717 = vpack.c.bf16 %v716, %v716
    %v718 = vld [vmem:[%s6] sm:$0xf]
    %v719 = vld [vmem:[%s6 + $0x4] sm:$0xf]
    %v720 = vld [vmem:[%s6 + $0x8] sm:$0xf]
    %v721 = vld [vmem:[%s6 + $0xc] sm:$0xf]
    %v722 = vld [vmem:[%s6 + $0x10] sm:$0xf]
    %v723 = vld [vmem:[%s6 + $0x14] sm:$0xf]
    %v724 = vld [vmem:[%s6 + $0x18] sm:$0xf]
    %v725 = vld [vmem:[%s6 + $0x1c] sm:$0xf]
    %v726 = vld [vmem:[%s6 + $0x20] sm:$0xf]
    %v727 = vld [vmem:[%s6 + $0x24] sm:$0xf]
    %v728 = vld [vmem:[%s6 + $0x28] sm:$0xf]
    %v729 = vld [vmem:[%s6 + $0x2c] sm:$0xf]
    %v730 = vld [vmem:[%s6 + $0x30] sm:$0xf]
    %v731 = vld [vmem:[%s6 + $0x34] sm:$0xf]
    %v732 = vld [vmem:[%s6 + $0x38] sm:$0xf]
    %v733 = vld [vmem:[%s6 + $0x3c] sm:$0xf]
    %v734 = vld [vmem:[%s7] sm:$0x1]
    %v736 = vlaneseq
    %v737 = vshrl.u32 %v736, 7
    %v738 = vsub.s32 0, %v737
    %v739 = vrot.slane %v734, %v738
    %v757 = vunpack.c.l.b16 %v718
    %v758 = vunpack.c.l.b16 %v719
    %v759 = vunpack.c.l.b16 %v720
    %v760 = vunpack.c.l.b16 %v721
    %v761 = vunpack.c.l.b16 %v722
    %v762 = vunpack.c.l.b16 %v723
    %v763 = vunpack.c.l.b16 %v724
    %v764 = vunpack.c.l.b16 %v725
    %v765 = vunpack.c.l.b16 %v726
    %v766 = vunpack.c.l.b16 %v727
    %v767 = vunpack.c.l.b16 %v728
    %v768 = vunpack.c.l.b16 %v729
    %v769 = vunpack.c.l.b16 %v730
    %v770 = vunpack.c.l.b16 %v731
    %v771 = vunpack.c.l.b16 %v732
    %v772 = vunpack.c.l.b16 %v733
    %v773 = vpack.c.b16 %v758, %v757
    %v774 = vpack.c.b16 %v760, %v759
    %v775 = vpack.c.b16 %v762, %v761
    %v776 = vpack.c.b16 %v764, %v763
    %v777 = vpack.c.b16 %v766, %v765
    %v778 = vpack.c.b16 %v768, %v767
    %v779 = vpack.c.b16 %v770, %v769
    %v780 = vpack.c.b16 %v772, %v771
    %789 = vmatprep.subr.bf16.mxu0 0
    %790 = vmatpush1.bf16.msra.mxu0 %v773
    %791 = vmatprep.subr.bf16.mxu0 0
    %792 = vmatpush1.bf16.msra.mxu0 %v774
    %793 = vmatprep.subr.bf16.mxu0 0
    %794 = vmatpush1.bf16.msra.mxu0 %v775
    %795 = vmatprep.subr.bf16.mxu0 0
    %796 = vmatpush1.bf16.msra.mxu0 %v776
    %797 = vmatprep.subr.bf16.mxu0 0
    %798 = vmatpush1.bf16.msra.mxu0 %v777
    %799 = vmatprep.subr.bf16.mxu0 0
    %800 = vmatpush1.bf16.msra.mxu0 %v778
    %801 = vmatprep.subr.bf16.mxu0 0
    %802 = vmatpush1.bf16.msra.mxu0 %v779
    %803 = vmatprep.subr.bf16.mxu0 0
    %804 = vmatpush1.bf16.msra.mxu0 %v780
    %805 = vmatprep.subr.bf16.mxu0 0
    %806 = vmatpush1.bf16.msra.mxu0 0
    %807 = vmatprep.subr.bf16.mxu0 0
    %808 = vmatpush1.bf16.msra.mxu0 0
    %809 = vmatprep.subr.bf16.mxu0 0
    %810 = vmatpush1.bf16.msra.mxu0 0
    %811 = vmatprep.subr.bf16.mxu0 0
    %812 = vmatpush1.bf16.msra.mxu0 0
    %813 = vmatprep.subr.bf16.mxu0 0
    %814 = vmatpush1.bf16.msra.mxu0 0
    %815 = vmatprep.subr.bf16.mxu0 0
    %816 = vmatpush1.bf16.msra.mxu0 0
    %817 = vmatprep.subr.bf16.mxu0 0
    %818 = vmatpush1.bf16.msra.mxu0 0
    %819 = vmatprep.subr.bf16.mxu0 0
    %820 = vmatpush1.bf16.msra.mxu0 0
    %821 = vmatprep.mubr.bf16.mxu0 0
    %822 = vmatmul.mubr.bf16.gmra.mrb[0].mxu0 %v717
    %v823 = vpop.f32.mrb[0].mxu0
    %v824 = vadd.f32 %v739, %v823
    %v825 = vpop.f32.mrb[0].mxu0
    %v826 = vpop.f32.mrb[0].mxu0
    %v827 = vpop.f32.mrb[0].mxu0
    %828 = vdwg.mxu0
    %v829 = vmax.f32 %v824, 0.0
    %v830 = vpack.c.bf16 %v829, %v829
    %v831 = vld [vmem:[%s8] sm:$0xf]
    %v832 = vld [vmem:[%s8 + $0x4] sm:$0xf]
    %v833 = vld [vmem:[%s8 + $0x8] sm:$0xf]
    %v834 = vld [vmem:[%s8 + $0xc] sm:$0xf]
    %v835 = vld [vmem:[%s8 + $0x10] sm:$0xf]
    %v836 = vld [vmem:[%s8 + $0x14] sm:$0xf]
    %v837 = vld [vmem:[%s8 + $0x18] sm:$0xf]
    %v838 = vld [vmem:[%s8 + $0x1c] sm:$0xf]
    %v839 = vld [vmem:[%s9] sm:$0x1]
    %v841 = vlaneseq
    %v842 = vshrl.u32 %v841, 7
    %v843 = vsub.s32 0, %v842
    %v844 = vrot.slane %v839, %v843
    %v854 = vunpack.c.l.b16 %v831
    %v855 = vunpack.c.l.b16 %v832
    %v856 = vunpack.c.l.b16 %v833
    %v857 = vunpack.c.l.b16 %v834
    %v858 = vunpack.c.l.b16 %v835
    %v859 = vunpack.c.l.b16 %v836
    %v860 = vunpack.c.l.b16 %v837
    %v861 = vunpack.c.l.b16 %v838
    %v862 = vpack.c.b16 %v855, %v854
    %v863 = vpack.c.b16 %v857, %v856
    %v864 = vpack.c.b16 %v859, %v858
    %v865 = vpack.c.b16 %v861, %v860
    %vm870 = vcmask 523264
    %v872 = vsel %vm870, %v830, 0
    %874 = vmatprep.subr.bf16.mxu0 0
    %875 = vmatpush1.bf16.msra.mxu0 %v862
    %876 = vmatprep.subr.bf16.mxu0 0
    %877 = vmatpush1.bf16.msra.mxu0 %v863
    %878 = vmatprep.subr.bf16.mxu0 0
    %879 = vmatpush1.bf16.msra.mxu0 %v864
    %880 = vmatprep.subr.bf16.mxu0 0
    %881 = vmatpush1.bf16.msra.mxu0 %v865
    %882 = vmatprep.subr.bf16.mxu0 0
    %883 = vmatpush1.bf16.msra.mxu0 0
    %884 = vmatprep.subr.bf16.mxu0 0
    %885 = vmatpush1.bf16.msra.mxu0 0
    %886 = vmatprep.subr.bf16.mxu0 0
    %887 = vmatpush1.bf16.msra.mxu0 0
    %888 = vmatprep.subr.bf16.mxu0 0
    %889 = vmatpush1.bf16.msra.mxu0 0
    %890 = vmatprep.subr.bf16.mxu0 0
    %891 = vmatpush1.bf16.msra.mxu0 0
    %892 = vmatprep.subr.bf16.mxu0 0
    %893 = vmatpush1.bf16.msra.mxu0 0
    %894 = vmatprep.subr.bf16.mxu0 0
    %895 = vmatpush1.bf16.msra.mxu0 0
    %896 = vmatprep.subr.bf16.mxu0 0
    %897 = vmatpush1.bf16.msra.mxu0 0
    %898 = vmatprep.subr.bf16.mxu0 0
    %899 = vmatpush1.bf16.msra.mxu0 0
    %900 = vmatprep.subr.bf16.mxu0 0
    %901 = vmatpush1.bf16.msra.mxu0 0
    %902 = vmatprep.subr.bf16.mxu0 0
    %903 = vmatpush1.bf16.msra.mxu0 0
    %904 = vmatprep.subr.bf16.mxu0 0
    %905 = vmatpush1.bf16.msra.mxu0 0
    %906 = vmatprep.mubr.bf16.mxu0 0
    %907 = vmatmul.mubr.bf16.gmra.mrb[0].mxu0 %v872
    %v908 = vpop.f32.mrb[0].mxu0
    %v909 = vadd.f32 %v844, %v908
    %v910 = vpop.f32.mrb[0].mxu0
    %v911 = vpop.f32.mrb[0].mxu0
    %v912 = vpop.f32.mrb[0].mxu0
    %913 = vdwg.mxu0
    %vm914 = vcmask 261120
    %915 = vst.msk [vmem:[%s18] sm:$0xff] %vm914, %v909
    %vm916 = vcmp.lt.s32.totalorder %v62, 16
    %v917 = vsel %vm916, 1, 0
    %v918 = vcvt.s32.f32 %v917
    %v919 = vmul.f32 %v909, %v918
    %v920 = vld [vmem:[%s1] sm:$0xff]
    %v921 = vmul.f32 %v909, 0.5
    %v922 = vsub.f32 1.0, %v918
    %v923 = vmul.f32 %v921, %v922
    %v924 = vmul.f32 %v923, 1.442695
    %v925 = vpow.pop %v924
    %v926 = vmul.f32 %v920, %v925
    %v927 = vadd.f32 %v919, %v926
    %v928 = vpack.c.bf16 %v927, %v927
    %v929 = vld [vmem:[%s10] sm:$0xf]
    %v930 = vld [vmem:[%s10 + $0x4] sm:$0xf]
    %v931 = vld [vmem:[%s10 + $0x8] sm:$0xf]
    %v932 = vld [vmem:[%s10 + $0xc] sm:$0xf]
    %v933 = vld [vmem:[%s11] sm:$0xf]
    %v934 = vld [vmem:[%s11 + $0x4] sm:$0x1]
    %v937 = vunpack.c.l.b16 %v933
    %v938 = vunpack.c.l.b16 %v934
    %v939 = vpack.c.b16 %v938, %v937
    %v941 = vsel %vm182, %v939, 0
    %943 = vmatprep.subr.bf16.mxu0 0
    %944 = vmatpush1.bf16.msra.mxu0 %v941
    %945 = vmatprep.subr.bf16.mxu0 0
    %946 = vmatpush1.bf16.msra.mxu0 0
    %947 = vmatprep.subr.bf16.mxu0 0
    %948 = vmatpush1.bf16.msra.mxu0 0
    %949 = vmatprep.subr.bf16.mxu0 0
    %950 = vmatpush1.bf16.msra.mxu0 0
    %951 = vmatprep.subr.bf16.mxu0 0
    %952 = vmatpush1.bf16.msra.mxu0 0
    %953 = vmatprep.subr.bf16.mxu0 0
    %954 = vmatpush1.bf16.msra.mxu0 0
    %955 = vmatprep.subr.bf16.mxu0 0
    %956 = vmatpush1.bf16.msra.mxu0 0
    %957 = vmatprep.subr.bf16.mxu0 0
    %958 = vmatpush1.bf16.msra.mxu0 0
    %959 = vmatprep.subr.bf16.mxu0 0
    %960 = vmatpush1.bf16.msra.mxu0 0
    %961 = vmatprep.subr.bf16.mxu0 0
    %962 = vmatpush1.bf16.msra.mxu0 0
    %963 = vmatprep.subr.bf16.mxu0 0
    %964 = vmatpush1.bf16.msra.mxu0 0
    %965 = vmatprep.subr.bf16.mxu0 0
    %966 = vmatpush1.bf16.msra.mxu0 0
    %967 = vmatprep.subr.bf16.mxu0 0
    %968 = vmatpush1.bf16.msra.mxu0 0
    %969 = vmatprep.subr.bf16.mxu0 0
    %970 = vmatpush1.bf16.msra.mxu0 0
    %971 = vmatprep.subr.bf16.mxu0 0
    %972 = vmatpush1.bf16.msra.mxu0 0
    %973 = vmatprep.subr.bf16.mxu0 0
    %974 = vmatpush1.bf16.msra.mxu0 0
    %975 = vmatprep.mubr.bf16.mxu0 0
    %976 = vmatmul.mubr.bf16.gmra.mrb[0].mxu0 %v180
    %v977 = vpop.f32.mrb[0].mxu0
    %v978 = vadd.f32 0.0, %v977
    %v979 = vpop.f32.mrb[0].mxu0
    %v980 = vpop.f32.mrb[0].mxu0
    %v981 = vpop.f32.mrb[0].mxu0
    %982 = vdwg.mxu0
    %v987 = vunpack.c.l.b16 %v929
    %v988 = vunpack.c.l.b16 %v930
    %v989 = vunpack.c.l.b16 %v931
    %v990 = vunpack.c.l.b16 %v932
    %v991 = vpack.c.b16 %v988, %v987
    %v992 = vpack.c.b16 %v990, %v989
    %v996 = vsel %vm914, %v928, 0
    %998 = vmatprep.subr.bf16.mxu0 0
    %999 = vmatpush1.bf16.msra.mxu0 %v991
    %1000 = vmatprep.subr.bf16.mxu0 0
    %1001 = vmatpush1.bf16.msra.mxu0 %v992
    %1002 = vmatprep.subr.bf16.mxu0 0
    %1003 = vmatpush1.bf16.msra.mxu0 0
    %1004 = vmatprep.subr.bf16.mxu0 0
    %1005 = vmatpush1.bf16.msra.mxu0 0
    %1006 = vmatprep.subr.bf16.mxu0 0
    %1007 = vmatpush1.bf16.msra.mxu0 0
    %1008 = vmatprep.subr.bf16.mxu0 0
    %1009 = vmatpush1.bf16.msra.mxu0 0
    %1010 = vmatprep.subr.bf16.mxu0 0
    %1011 = vmatpush1.bf16.msra.mxu0 0
    %1012 = vmatprep.subr.bf16.mxu0 0
    %1013 = vmatpush1.bf16.msra.mxu0 0
    %1014 = vmatprep.subr.bf16.mxu0 0
    %1015 = vmatpush1.bf16.msra.mxu0 0
    %1016 = vmatprep.subr.bf16.mxu0 0
    %1017 = vmatpush1.bf16.msra.mxu0 0
    %1018 = vmatprep.subr.bf16.mxu0 0
    %1019 = vmatpush1.bf16.msra.mxu0 0
    %1020 = vmatprep.subr.bf16.mxu0 0
    %1021 = vmatpush1.bf16.msra.mxu0 0
    %1022 = vmatprep.subr.bf16.mxu0 0
    %1023 = vmatpush1.bf16.msra.mxu0 0
    %1024 = vmatprep.subr.bf16.mxu0 0
    %1025 = vmatpush1.bf16.msra.mxu0 0
    %1026 = vmatprep.subr.bf16.mxu0 0
    %1027 = vmatpush1.bf16.msra.mxu0 0
    %1028 = vmatprep.subr.bf16.mxu0 0
    %1029 = vmatpush1.bf16.msra.mxu0 0
    %1030 = vmatprep.mubr.bf16.mxu0 0
    %1031 = vmatmul.mubr.bf16.gmra.mrb[0].mxu0 %v996
    %v1032 = vpop.f32.mrb[0].mxu0
    %v1033 = vadd.f32 %v978, %v1032
    %v1034 = vpop.f32.mrb[0].mxu0
    %v1035 = vpop.f32.mrb[0].mxu0
    %v1036 = vpop.f32.mrb[0].mxu0
    %1037 = vdwg.mxu0
    %v1038 = vld [vmem:[%s12] sm:$0x1]
    %v1040 = vlaneseq
    %v1041 = vshrl.u32 %v1040, 7
    %v1042 = vsub.s32 0, %v1041
    %v1043 = vrot.slane %v1038, %v1042
    %v1045 = vadd.f32 %v1033, %v1043
    %v1046 = vmax.f32 %v1045, 0.0
    %v1047 = vpack.c.bf16 %v1046, %v1046
    %v1048 = vld [vmem:[%s13] sm:$0xf]
    %v1049 = vld [vmem:[%s13 + $0x4] sm:$0xf]
    %v1050 = vld [vmem:[%s13 + $0x8] sm:$0xf]
    %v1051 = vld [vmem:[%s13 + $0xc] sm:$0xf]
    %v1052 = vld [vmem:[%s13 + $0x10] sm:$0xf]
    %v1053 = vld [vmem:[%s13 + $0x14] sm:$0xf]
    %v1054 = vld [vmem:[%s13 + $0x18] sm:$0xf]
    %v1055 = vld [vmem:[%s13 + $0x1c] sm:$0xf]
    %v1056 = vld [vmem:[%s14] sm:$0x1]
    %v1058 = vlaneseq
    %v1059 = vshrl.u32 %v1058, 7
    %v1060 = vsub.s32 0, %v1059
    %v1061 = vrot.slane %v1056, %v1060
    %v1071 = vunpack.c.l.b16 %v1048
    %v1072 = vunpack.c.l.b16 %v1049
    %v1073 = vunpack.c.l.b16 %v1050
    %v1074 = vunpack.c.l.b16 %v1051
    %v1075 = vunpack.c.l.b16 %v1052
    %v1076 = vunpack.c.l.b16 %v1053
    %v1077 = vunpack.c.l.b16 %v1054
    %v1078 = vunpack.c.l.b16 %v1055
    %v1079 = vpack.c.b16 %v1072, %v1071
    %v1080 = vpack.c.b16 %v1074, %v1073
    %v1081 = vpack.c.b16 %v1076, %v1075
    %v1082 = vpack.c.b16 %v1078, %v1077
    %v1088 = vsel %vm870, %v1047, 0
    %1090 = vmatprep.subr.bf16.mxu0 0
    %1091 = vmatpush1.bf16.msra.mxu0 %v1079
    %1092 = vmatprep.subr.bf16.mxu0 0
    %1093 = vmatpush1.bf16.msra.mxu0 %v1080
    %1094 = vmatprep.subr.bf16.mxu0 0
    %1095 = vmatpush1.bf16.msra.mxu0 %v1081
    %1096 = vmatprep.subr.bf16.mxu0 0
    %1097 = vmatpush1.bf16.msra.mxu0 %v1082
    %1098 = vmatprep.subr.bf16.mxu0 0
    %1099 = vmatpush1.bf16.msra.mxu0 0
    %1100 = vmatprep.subr.bf16.mxu0 0
    %1101 = vmatpush1.bf16.msra.mxu0 0
    %1102 = vmatprep.subr.bf16.mxu0 0
    %1103 = vmatpush1.bf16.msra.mxu0 0
    %1104 = vmatprep.subr.bf16.mxu0 0
    %1105 = vmatpush1.bf16.msra.mxu0 0
    %1106 = vmatprep.subr.bf16.mxu0 0
    %1107 = vmatpush1.bf16.msra.mxu0 0
    %1108 = vmatprep.subr.bf16.mxu0 0
    %1109 = vmatpush1.bf16.msra.mxu0 0
    %1110 = vmatprep.subr.bf16.mxu0 0
    %1111 = vmatpush1.bf16.msra.mxu0 0
    %1112 = vmatprep.subr.bf16.mxu0 0
    %1113 = vmatpush1.bf16.msra.mxu0 0
    %1114 = vmatprep.subr.bf16.mxu0 0
    %1115 = vmatpush1.bf16.msra.mxu0 0
    %1116 = vmatprep.subr.bf16.mxu0 0
    %1117 = vmatpush1.bf16.msra.mxu0 0
    %1118 = vmatprep.subr.bf16.mxu0 0
    %1119 = vmatpush1.bf16.msra.mxu0 0
    %1120 = vmatprep.subr.bf16.mxu0 0
    %1121 = vmatpush1.bf16.msra.mxu0 0
    %1122 = vmatprep.mubr.bf16.mxu0 0
    %1123 = vmatmul.mubr.bf16.gmra.mrb[0].mxu0 %v1088
    %v1124 = vpop.f32.mrb[0].mxu0
    %v1125 = vadd.f32 %v1061, %v1124
    %v1126 = vpop.f32.mrb[0].mxu0
    %v1127 = vpop.f32.mrb[0].mxu0
    %v1128 = vpop.f32.mrb[0].mxu0
    %1129 = vdwg.mxu0
    %v1130 = vmax.f32 %v1125, 0.0
    %v1131 = vpack.c.bf16 %v1130, %v1130
    %v1132 = vld [vmem:[%s15] sm:$0xff]
    %v1133 = vld [vmem:[%s15 + $0x8] sm:$0xff]
    %v1134 = vld [vmem:[%s15 + $0x10] sm:$0xff]
    %v1135 = vld [vmem:[%s15 + $0x18] sm:$0xf]
    %v1136 = vld [vmem:[%s15 + $0x1c] sm:$0xff]
    %v1137 = vld [vmem:[%s15 + $0x24] sm:$0xff]
    %v1138 = vld [vmem:[%s15 + $0x2c] sm:$0xff]
    %v1139 = vld [vmem:[%s15 + $0x34] sm:$0xf]
    %v1140 = vld [vmem:[%s15 + $0x38] sm:$0xff]
    %v1141 = vld [vmem:[%s15 + $0x40] sm:$0xff]
    %v1142 = vld [vmem:[%s15 + $0x48] sm:$0xff]
    %v1143 = vld [vmem:[%s15 + $0x50] sm:$0xf]
    %v1144 = vld [vmem:[%s15 + $0x54] sm:$0xff]
    %v1145 = vld [vmem:[%s15 + $0x5c] sm:$0xff]
    %v1146 = vld [vmem:[%s15 + $0x64] sm:$0xff]
    %v1147 = vld [vmem:[%s15 + $0x6c] sm:$0xf]
    %v1148 = vld [vmem:[%s15 + $0x70] sm:$0xff]
    %v1149 = vld [vmem:[%s15 + $0x78] sm:$0xff]
    %v1150 = vld [vmem:[%s15 + $0x80] sm:$0xff]
    %v1151 = vld [vmem:[%s15 + $0x88] sm:$0xf]
    %v1152 = vld [vmem:[%s15 + $0x8c] sm:$0xff]
    %v1153 = vld [vmem:[%s15 + $0x94] sm:$0xff]
    %v1154 = vld [vmem:[%s15 + $0x9c] sm:$0xff]
    %v1155 = vld [vmem:[%s15 + $0xa4] sm:$0xf]
    %v1156 = vld [vmem:[%s15 + $0xa8] sm:$0xff]
    %v1157 = vld [vmem:[%s15 + $0xb0] sm:$0xff]
    %v1158 = vld [vmem:[%s15 + $0xb8] sm:$0xff]
    %v1159 = vld [vmem:[%s15 + $0xc0] sm:$0xf]
    %v1160 = vld [vmem:[%s15 + $0xc4] sm:$0xff]
    %v1161 = vld [vmem:[%s15 + $0xcc] sm:$0xff]
    %v1162 = vld [vmem:[%s15 + $0xd4] sm:$0xff]
    %v1163 = vld [vmem:[%s15 + $0xdc] sm:$0xf]
    %v1164 = vld [vmem:[%s15 + $0xe0] sm:$0xff]
    %v1165 = vld [vmem:[%s15 + $0xe8] sm:$0xff]
    %v1166 = vld [vmem:[%s15 + $0xf0] sm:$0xff]
    %v1167 = vld [vmem:[%s15 + $0xf8] sm:$0xf]
    %v1168 = vld [vmem:[%s15 + $0xfc] sm:$0xff]
    %v1169 = vld [vmem:[%s15 + $0x104] sm:$0xff]
    %v1170 = vld [vmem:[%s15 + $0x10c] sm:$0xff]
    %v1171 = vld [vmem:[%s15 + $0x114] sm:$0xf]
    %v1172 = vld [vmem:[%s15 + $0x118] sm:$0xff]
    %v1173 = vld [vmem:[%s15 + $0x120] sm:$0xff]
    %v1174 = vld [vmem:[%s15 + $0x128] sm:$0xff]
    %v1175 = vld [vmem:[%s15 + $0x130] sm:$0xf]
    %v1176 = vld [vmem:[%s15 + $0x134] sm:$0xff]
    %v1177 = vld [vmem:[%s15 + $0x13c] sm:$0xff]
    %v1178 = vld [vmem:[%s15 + $0x144] sm:$0xff]
    %v1179 = vld [vmem:[%s15 + $0x14c] sm:$0xf]
    %v1180 = vld [vmem:[%s15 + $0x150] sm:$0xff]
    %v1181 = vld [vmem:[%s15 + $0x158] sm:$0xff]
    %v1182 = vld [vmem:[%s15 + $0x160] sm:$0xff]
    %v1183 = vld [vmem:[%s15 + $0x168] sm:$0xf]
    %v1184 = vld [vmem:[%s15 + $0x16c] sm:$0xff]
    %v1185 = vld [vmem:[%s15 + $0x174] sm:$0xff]
    %v1186 = vld [vmem:[%s15 + $0x17c] sm:$0xff]
    %v1187 = vld [vmem:[%s15 + $0x184] sm:$0xf]
    %v1188 = vld [vmem:[%s15 + $0x188] sm:$0xff]
    %v1189 = vld [vmem:[%s15 + $0x190] sm:$0xff]
    %v1190 = vld [vmem:[%s15 + $0x198] sm:$0xff]
    %v1191 = vld [vmem:[%s15 + $0x1a0] sm:$0xf]
    %v1192 = vld [vmem:[%s15 + $0x1a4] sm:$0xff]
    %v1193 = vld [vmem:[%s15 + $0x1ac] sm:$0xff]
    %v1194 = vld [vmem:[%s15 + $0x1b4] sm:$0xff]
    %v1195 = vld [vmem:[%s15 + $0x1bc] sm:$0xf]
    %v1196 = vld [vmem:[%s16] sm:$0x7f]
    %v1198 = vlaneseq
    %v1199 = vshrl.u32 %v1198, 7
    %v1200 = vsub.s32 0, %v1199
    %v1201 = vrot.slane %v1196, %v1200
    %v1202 = vlaneseq
    %v1203 = vshrl.u32 %v1202, 7
    %v1204 = vsub.s32 1, %v1203
    %v1205 = vrot.slane %v1196, %v1204
    %v1206 = vlaneseq
    %v1207 = vshrl.u32 %v1206, 7
    %v1208 = vsub.s32 2, %v1207
    %v1209 = vrot.slane %v1196, %v1208
    %v1210 = vlaneseq
    %v1211 = vshrl.u32 %v1210, 7
    %v1212 = vsub.s32 3, %v1211
    %v1213 = vrot.slane %v1196, %v1212
    %v1214 = vlaneseq
    %v1215 = vshrl.u32 %v1214, 7
    %v1216 = vsub.s32 4, %v1215
    %v1217 = vrot.slane %v1196, %v1216
    %v1218 = vlaneseq
    %v1219 = vshrl.u32 %v1218, 7
    %v1220 = vsub.s32 5, %v1219
    %v1221 = vrot.slane %v1196, %v1220
    %v1222 = vlaneseq
    %v1223 = vshrl.u32 %v1222, 7
    %v1224 = vsub.s32 6, %v1223
    %v1225 = vrot.slane %v1196, %v1224
    %v1297 = vunpack.c.l.b16 %v1132
    %v1298 = vunpack.c.h.b16 %v1132
    %v1299 = vunpack.c.l.b16 %v1133
    %v1300 = vunpack.c.h.b16 %v1133
    %v1301 = vunpack.c.l.b16 %v1134
    %v1302 = vunpack.c.h.b16 %v1134
    %v1303 = vunpack.c.l.b16 %v1135
    %v1304 = vunpack.c.l.b16 %v1136
    %v1305 = vunpack.c.h.b16 %v1136
    %v1306 = vunpack.c.l.b16 %v1137
    %v1307 = vunpack.c.h.b16 %v1137
    %v1308 = vunpack.c.l.b16 %v1138
    %v1309 = vunpack.c.h.b16 %v1138
    %v1310 = vunpack.c.l.b16 %v1139
    %v1311 = vunpack.c.l.b16 %v1140
    %v1312 = vunpack.c.h.b16 %v1140
    %v1313 = vunpack.c.l.b16 %v1141
    %v1314 = vunpack.c.h.b16 %v1141
    %v1315 = vunpack.c.l.b16 %v1142
    %v1316 = vunpack.c.h.b16 %v1142
    %v1317 = vunpack.c.l.b16 %v1143
    %v1318 = vunpack.c.l.b16 %v1144
    %v1319 = vunpack.c.h.b16 %v1144
    %v1320 = vunpack.c.l.b16 %v1145
    %v1321 = vunpack.c.h.b16 %v1145
    %v1322 = vunpack.c.l.b16 %v1146
    %v1323 = vunpack.c.h.b16 %v1146
    %v1324 = vunpack.c.l.b16 %v1147
    %v1325 = vunpack.c.l.b16 %v1148
    %v1326 = vunpack.c.h.b16 %v1148
    %v1327 = vunpack.c.l.b16 %v1149
    %v1328 = vunpack.c.h.b16 %v1149
    %v1329 = vunpack.c.l.b16 %v1150
    %v1330 = vunpack.c.h.b16 %v1150
    %v1331 = vunpack.c.l.b16 %v1151
    %v1332 = vunpack.c.l.b16 %v1152
    %v1333 = vunpack.c.h.b16 %v1152
    %v1334 = vunpack.c.l.b16 %v1153
    %v1335 = vunpack.c.h.b16 %v1153
    %v1336 = vunpack.c.l.b16 %v1154
    %v1337 = vunpack.c.h.b16 %v1154
    %v1338 = vunpack.c.l.b16 %v1155
    %v1339 = vunpack.c.l.b16 %v1156
    %v1340 = vunpack.c.h.b16 %v1156
    %v1341 = vunpack.c.l.b16 %v1157
    %v1342 = vunpack.c.h.b16 %v1157
    %v1343 = vunpack.c.l.b16 %v1158
    %v1344 = vunpack.c.h.b16 %v1158
    %v1345 = vunpack.c.l.b16 %v1159
    %v1346 = vunpack.c.l.b16 %v1160
    %v1347 = vunpack.c.h.b16 %v1160
    %v1348 = vunpack.c.l.b16 %v1161
    %v1349 = vunpack.c.h.b16 %v1161
    %v1350 = vunpack.c.l.b16 %v1162
    %v1351 = vunpack.c.h.b16 %v1162
    %v1352 = vunpack.c.l.b16 %v1163
    %v1353 = vunpack.c.l.b16 %v1164
    %v1354 = vunpack.c.h.b16 %v1164
    %v1355 = vunpack.c.l.b16 %v1165
    %v1356 = vunpack.c.h.b16 %v1165
    %v1357 = vunpack.c.l.b16 %v1166
    %v1358 = vunpack.c.h.b16 %v1166
    %v1359 = vunpack.c.l.b16 %v1167
    %v1360 = vunpack.c.l.b16 %v1168
    %v1361 = vunpack.c.h.b16 %v1168
    %v1362 = vunpack.c.l.b16 %v1169
    %v1363 = vunpack.c.h.b16 %v1169
    %v1364 = vunpack.c.l.b16 %v1170
    %v1365 = vunpack.c.h.b16 %v1170
    %v1366 = vunpack.c.l.b16 %v1171
    %v1367 = vunpack.c.l.b16 %v1172
    %v1368 = vunpack.c.h.b16 %v1172
    %v1369 = vunpack.c.l.b16 %v1173
    %v1370 = vunpack.c.h.b16 %v1173
    %v1371 = vunpack.c.l.b16 %v1174
    %v1372 = vunpack.c.h.b16 %v1174
    %v1373 = vunpack.c.l.b16 %v1175
    %v1374 = vunpack.c.l.b16 %v1176
    %v1375 = vunpack.c.h.b16 %v1176
    %v1376 = vunpack.c.l.b16 %v1177
    %v1377 = vunpack.c.h.b16 %v1177
    %v1378 = vunpack.c.l.b16 %v1178
    %v1379 = vunpack.c.h.b16 %v1178
    %v1380 = vunpack.c.l.b16 %v1179
    %v1381 = vunpack.c.l.b16 %v1180
    %v1382 = vunpack.c.h.b16 %v1180
    %v1383 = vunpack.c.l.b16 %v1181
    %v1384 = vunpack.c.h.b16 %v1181
    %v1385 = vunpack.c.l.b16 %v1182
    %v1386 = vunpack.c.h.b16 %v1182
    %v1387 = vunpack.c.l.b16 %v1183
    %v1388 = vunpack.c.l.b16 %v1184
    %v1389 = vunpack.c.h.b16 %v1184
    %v1390 = vunpack.c.l.b16 %v1185
    %v1391 = vunpack.c.h.b16 %v1185
    %v1392 = vunpack.c.l.b16 %v1186
    %v1393 = vunpack.c.h.b16 %v1186
    %v1394 = vunpack.c.l.b16 %v1187
    %v1395 = vunpack.c.l.b16 %v1188
    %v1396 = vunpack.c.h.b16 %v1188
    %v1397 = vunpack.c.l.b16 %v1189
    %v1398 = vunpack.c.h.b16 %v1189
    %v1399 = vunpack.c.l.b16 %v1190
    %v1400 = vunpack.c.h.b16 %v1190
    %v1401 = vunpack.c.l.b16 %v1191
    %v1402 = vunpack.c.l.b16 %v1192
    %v1403 = vunpack.c.h.b16 %v1192
    %v1404 = vunpack.c.l.b16 %v1193
    %v1405 = vunpack.c.h.b16 %v1193
    %v1406 = vunpack.c.l.b16 %v1194
    %v1407 = vunpack.c.h.b16 %v1194
    %v1408 = vunpack.c.l.b16 %v1195
    %v1409 = vpack.c.b16 %v1304, %v1297
    %v1410 = vpack.c.b16 %v1305, %v1298
    %v1411 = vpack.c.b16 %v1306, %v1299
    %v1412 = vpack.c.b16 %v1307, %v1300
    %v1413 = vpack.c.b16 %v1308, %v1301
    %v1414 = vpack.c.b16 %v1309, %v1302
    %v1415 = vpack.c.b16 %v1310, %v1303
    %v1416 = vpack.c.b16 %v1318, %v1311
    %v1417 = vpack.c.b16 %v1319, %v1312
    %v1418 = vpack.c.b16 %v1320, %v1313
    %v1419 = vpack.c.b16 %v1321, %v1314
    %v1420 = vpack.c.b16 %v1322, %v1315
    %v1421 = vpack.c.b16 %v1323, %v1316
    %v1422 = vpack.c.b16 %v1324, %v1317
    %v1423 = vpack.c.b16 %v1332, %v1325
    %v1424 = vpack.c.b16 %v1333, %v1326
    %v1425 = vpack.c.b16 %v1334, %v1327
    %v1426 = vpack.c.b16 %v1335, %v1328
    %v1427 = vpack.c.b16 %v1336, %v1329
    %v1428 = vpack.c.b16 %v1337, %v1330
    %v1429 = vpack.c.b16 %v1338, %v1331
    %v1430 = vpack.c.b16 %v1346, %v1339
    %v1431 = vpack.c.b16 %v1347, %v1340
    %v1432 = vpack.c.b16 %v1348, %v1341
    %v1433 = vpack.c.b16 %v1349, %v1342
    %v1434 = vpack.c.b16 %v1350, %v1343
    %v1435 = vpack.c.b16 %v1351, %v1344
    %v1436 = vpack.c.b16 %v1352, %v1345
    %v1437 = vpack.c.b16 %v1360, %v1353
    %v1438 = vpack.c.b16 %v1361, %v1354
    %v1439 = vpack.c.b16 %v1362, %v1355
    %v1440 = vpack.c.b16 %v1363, %v1356
    %v1441 = vpack.c.b16 %v1364, %v1357
    %v1442 = vpack.c.b16 %v1365, %v1358
    %v1443 = vpack.c.b16 %v1366, %v1359
    %v1444 = vpack.c.b16 %v1374, %v1367
    %v1445 = vpack.c.b16 %v1375, %v1368
    %v1446 = vpack.c.b16 %v1376, %v1369
    %v1447 = vpack.c.b16 %v1377, %v1370
    %v1448 = vpack.c.b16 %v1378, %v1371
    %v1449 = vpack.c.b16 %v1379, %v1372
    %v1450 = vpack.c.b16 %v1380, %v1373
    %v1451 = vpack.c.b16 %v1388, %v1381
    %v1452 = vpack.c.b16 %v1389, %v1382
    %v1453 = vpack.c.b16 %v1390, %v1383
    %v1454 = vpack.c.b16 %v1391, %v1384
    %v1455 = vpack.c.b16 %v1392, %v1385
    %v1456 = vpack.c.b16 %v1393, %v1386
    %v1457 = vpack.c.b16 %v1394, %v1387
    %v1458 = vpack.c.b16 %v1402, %v1395
    %v1459 = vpack.c.b16 %v1403, %v1396
    %v1460 = vpack.c.b16 %v1404, %v1397
    %v1461 = vpack.c.b16 %v1405, %v1398
    %v1462 = vpack.c.b16 %v1406, %v1399
    %v1463 = vpack.c.b16 %v1407, %v1400
    %v1464 = vpack.c.b16 %v1408, %v1401
    %1521 = vmatprep.subr.bf16.mxu0 %v1410
    %1522 = vmatpush1.bf16.msra.mxu0 %v1409
    %1523 = vmatprep.subr.bf16.mxu0 %v1417
    %1524 = vmatpush1.bf16.msra.mxu0 %v1416
    %1525 = vmatprep.subr.bf16.mxu0 %v1424
    %1526 = vmatpush1.bf16.msra.mxu0 %v1423
    %1527 = vmatprep.subr.bf16.mxu0 %v1431
    %1528 = vmatpush1.bf16.msra.mxu0 %v1430
    %1529 = vmatprep.subr.bf16.mxu0 %v1438
    %1530 = vmatpush1.bf16.msra.mxu0 %v1437
    %1531 = vmatprep.subr.bf16.mxu0 %v1445
    %1532 = vmatpush1.bf16.msra.mxu0 %v1444
    %1533 = vmatprep.subr.bf16.mxu0 %v1452
    %1534 = vmatpush1.bf16.msra.mxu0 %v1451
    %1535 = vmatprep.subr.bf16.mxu0 %v1459
    %1536 = vmatpush1.bf16.msra.mxu0 %v1458
    %1537 = vmatprep.subr.bf16.mxu0 0
    %1538 = vmatpush1.bf16.msra.mxu0 0
    %1539 = vmatprep.subr.bf16.mxu0 0
    %1540 = vmatpush1.bf16.msra.mxu0 0
    %1541 = vmatprep.subr.bf16.mxu0 0
    %1542 = vmatpush1.bf16.msra.mxu0 0
    %1543 = vmatprep.subr.bf16.mxu0 0
    %1544 = vmatpush1.bf16.msra.mxu0 0
    %1545 = vmatprep.subr.bf16.mxu0 0
    %1546 = vmatpush1.bf16.msra.mxu0 0
    %1547 = vmatprep.subr.bf16.mxu0 0
    %1548 = vmatpush1.bf16.msra.mxu0 0
    %1549 = vmatprep.subr.bf16.mxu0 0
    %1550 = vmatpush1.bf16.msra.mxu0 0
    %1551 = vmatprep.subr.bf16.mxu0 0
    %1552 = vmatpush1.bf16.msra.mxu0 0
    %1553 = vmatprep.mubr.bf16.mxu0 0
    %1554 = vmatmul.mubr.bf16.gmra.mrb[0].mxu0 %v1131
    %v1555 = vpop.f32.mrb[0].mxu0
    %v1556 = vadd.f32 %v1201, %v1555
    %v1557 = vpop.f32.mrb[0].mxu0
    %v1558 = vadd.f32 %v1205, %v1557
    %v1559 = vpop.f32.mrb[0].mxu0
    %v1560 = vpop.f32.mrb[0].mxu0
    %1561 = vdwg.mxu0
    %1562 = vmatprep.subr.bf16.mxu0 %v1412
    %1563 = vmatpush1.bf16.msra.mxu0 %v1411
    %1564 = vmatprep.subr.bf16.mxu0 %v1419
    %1565 = vmatpush1.bf16.msra.mxu0 %v1418
    %1566 = vmatprep.subr.bf16.mxu0 %v1426
    %1567 = vmatpush1.bf16.msra.mxu0 %v1425
    %1568 = vmatprep.subr.bf16.mxu0 %v1433
    %1569 = vmatpush1.bf16.msra.mxu0 %v1432
    %1570 = vmatprep.subr.bf16.mxu0 %v1440
    %1571 = vmatpush1.bf16.msra.mxu0 %v1439
    %1572 = vmatprep.subr.bf16.mxu0 %v1447
    %1573 = vmatpush1.bf16.msra.mxu0 %v1446
    %1574 = vmatprep.subr.bf16.mxu0 %v1454
    %1575 = vmatpush1.bf16.msra.mxu0 %v1453
    %1576 = vmatprep.subr.bf16.mxu0 %v1461
    %1577 = vmatpush1.bf16.msra.mxu0 %v1460
    %1578 = vmatprep.subr.bf16.mxu0 0
    %1579 = vmatpush1.bf16.msra.mxu0 0
    %1580 = vmatprep.subr.bf16.mxu0 0
    %1581 = vmatpush1.bf16.msra.mxu0 0
    %1582 = vmatprep.subr.bf16.mxu0 0
    %1583 = vmatpush1.bf16.msra.mxu0 0
    %1584 = vmatprep.subr.bf16.mxu0 0
    %1585 = vmatpush1.bf16.msra.mxu0 0
    %1586 = vmatprep.subr.bf16.mxu0 0
    %1587 = vmatpush1.bf16.msra.mxu0 0
    %1588 = vmatprep.subr.bf16.mxu0 0
    %1589 = vmatpush1.bf16.msra.mxu0 0
    %1590 = vmatprep.subr.bf16.mxu0 0
    %1591 = vmatpush1.bf16.msra.mxu0 0
    %1592 = vmatprep.subr.bf16.mxu0 0
    %1593 = vmatpush1.bf16.msra.mxu0 0
    %1594 = vmatprep.mubr.bf16.mxu0 0
    %1595 = vmatmul.mubr.bf16.gmra.mrb[0].mxu0 %v1131
    %v1596 = vpop.f32.mrb[0].mxu0
    %v1597 = vadd.f32 %v1209, %v1596
    %v1598 = vpop.f32.mrb[0].mxu0
    %v1599 = vadd.f32 %v1213, %v1598
    %v1600 = vpop.f32.mrb[0].mxu0
    %v1601 = vpop.f32.mrb[0].mxu0
    %1602 = vdwg.mxu0
    %1603 = vmatprep.subr.bf16.mxu0 %v1414
    %1604 = vmatpush1.bf16.msra.mxu0 %v1413
    %1605 = vmatprep.subr.bf16.mxu0 %v1421
    %1606 = vmatpush1.bf16.msra.mxu0 %v1420
    %1607 = vmatprep.subr.bf16.mxu0 %v1428
    %1608 = vmatpush1.bf16.msra.mxu0 %v1427
    %1609 = vmatprep.subr.bf16.mxu0 %v1435
    %1610 = vmatpush1.bf16.msra.mxu0 %v1434
    %1611 = vmatprep.subr.bf16.mxu0 %v1442
    %1612 = vmatpush1.bf16.msra.mxu0 %v1441
    %1613 = vmatprep.subr.bf16.mxu0 %v1449
    %1614 = vmatpush1.bf16.msra.mxu0 %v1448
    %1615 = vmatprep.subr.bf16.mxu0 %v1456
    %1616 = vmatpush1.bf16.msra.mxu0 %v1455
    %1617 = vmatprep.subr.bf16.mxu0 %v1463
    %1618 = vmatpush1.bf16.msra.mxu0 %v1462
    %1619 = vmatprep.subr.bf16.mxu0 0
    %1620 = vmatpush1.bf16.msra.mxu0 0
    %1621 = vmatprep.subr.bf16.mxu0 0
    %1622 = vmatpush1.bf16.msra.mxu0 0
    %1623 = vmatprep.subr.bf16.mxu0 0
    %1624 = vmatpush1.bf16.msra.mxu0 0
    %1625 = vmatprep.subr.bf16.mxu0 0
    %1626 = vmatpush1.bf16.msra.mxu0 0
    %1627 = vmatprep.subr.bf16.mxu0 0
    %1628 = vmatpush1.bf16.msra.mxu0 0
    %1629 = vmatprep.subr.bf16.mxu0 0
    %1630 = vmatpush1.bf16.msra.mxu0 0
    %1631 = vmatprep.subr.bf16.mxu0 0
    %1632 = vmatpush1.bf16.msra.mxu0 0
    %1633 = vmatprep.subr.bf16.mxu0 0
    %1634 = vmatpush1.bf16.msra.mxu0 0
    %1635 = vmatprep.mubr.bf16.mxu0 0
    %1636 = vmatmul.mubr.bf16.gmra.mrb[0].mxu0 %v1131
    %v1637 = vpop.f32.mrb[0].mxu0
    %v1638 = vadd.f32 %v1217, %v1637
    %v1639 = vpop.f32.mrb[0].mxu0
    %v1640 = vadd.f32 %v1221, %v1639
    %v1641 = vpop.f32.mrb[0].mxu0
    %v1642 = vpop.f32.mrb[0].mxu0
    %1643 = vdwg.mxu0
    %1644 = vmatprep.subr.bf16.mxu0 0
    %1645 = vmatpush1.bf16.msra.mxu0 %v1415
    %1646 = vmatprep.subr.bf16.mxu0 0
    %1647 = vmatpush1.bf16.msra.mxu0 %v1422
    %1648 = vmatprep.subr.bf16.mxu0 0
    %1649 = vmatpush1.bf16.msra.mxu0 %v1429
    %1650 = vmatprep.subr.bf16.mxu0 0
    %1651 = vmatpush1.bf16.msra.mxu0 %v1436
    %1652 = vmatprep.subr.bf16.mxu0 0
    %1653 = vmatpush1.bf16.msra.mxu0 %v1443
    %1654 = vmatprep.subr.bf16.mxu0 0
    %1655 = vmatpush1.bf16.msra.mxu0 %v1450
    %1656 = vmatprep.subr.bf16.mxu0 0
    %1657 = vmatpush1.bf16.msra.mxu0 %v1457
    %1658 = vmatprep.subr.bf16.mxu0 0
    %1659 = vmatpush1.bf16.msra.mxu0 %v1464
    %1660 = vmatprep.subr.bf16.mxu0 0
    %1661 = vmatpush1.bf16.msra.mxu0 0
    %1662 = vmatprep.subr.bf16.mxu0 0
    %1663 = vmatpush1.bf16.msra.mxu0 0
    %1664 = vmatprep.subr.bf16.mxu0 0
    %1665 = vmatpush1.bf16.msra.mxu0 0
    %1666 = vmatprep.subr.bf16.mxu0 0
    %1667 = vmatpush1.bf16.msra.mxu0 0
    %1668 = vmatprep.subr.bf16.mxu0 0
    %1669 = vmatpush1.bf16.msra.mxu0 0
    %1670 = vmatprep.subr.bf16.mxu0 0
    %1671 = vmatpush1.bf16.msra.mxu0 0
    %1672 = vmatprep.subr.bf16.mxu0 0
    %1673 = vmatpush1.bf16.msra.mxu0 0
    %1674 = vmatprep.subr.bf16.mxu0 0
    %1675 = vmatpush1.bf16.msra.mxu0 0
    %1676 = vmatprep.mubr.bf16.mxu0 0
    %1677 = vmatmul.mubr.bf16.gmra.mrb[0].mxu0 %v1131
    %v1678 = vpop.f32.mrb[0].mxu0
    %v1679 = vadd.f32 %v1225, %v1678
    %v1680 = vpop.f32.mrb[0].mxu0
    %v1681 = vpop.f32.mrb[0].mxu0
    %v1682 = vpop.f32.mrb[0].mxu0
    %1683 = vdwg.mxu0
    %v1684 = vxor.u32 %v1556, 2147483648
    %v1685 = vxor.u32 %v1558, 2147483648
    %v1686 = vxor.u32 %v1597, 2147483648
    %v1687 = vxor.u32 %v1599, 2147483648
    %v1688 = vxor.u32 %v1638, 2147483648
    %v1689 = vxor.u32 %v1640, 2147483648
    %v1690 = vxor.u32 %v1679, 2147483648
    %v1691 = vmul.f32 %v1684, 1.442695
    %v1692 = vpow.pop %v1691
    %v1693 = vmul.f32 %v1685, 1.442695
    %v1694 = vpow.pop %v1693
    %v1695 = vmul.f32 %v1686, 1.442695
    %v1696 = vpow.pop %v1695
    %v1697 = vmul.f32 %v1687, 1.442695
    %v1698 = vpow.pop %v1697
    %v1699 = vmul.f32 %v1688, 1.442695
    %v1700 = vpow.pop %v1699
    %v1701 = vmul.f32 %v1689, 1.442695
    %v1702 = vpow.pop %v1701
    %v1703 = vmul.f32 %v1690, 1.442695
    %v1704 = vpow.pop %v1703
    %v1705 = vadd.f32 %v1692, 1.0
    %v1706 = vadd.f32 %v1694, 1.0
    %v1707 = vadd.f32 %v1696, 1.0
    %v1708 = vadd.f32 %v1698, 1.0
    %v1709 = vadd.f32 %v1700, 1.0
    %v1710 = vadd.f32 %v1702, 1.0
    %v1711 = vadd.f32 %v1704, 1.0
    %v1712 = vrcp.pop %v1705
    %v1713 = vmul.f32 1.0, %v1712
    %v1714 = vrcp.pop %v1706
    %v1715 = vmul.f32 1.0, %v1714
    %v1716 = vrcp.pop %v1707
    %v1717 = vmul.f32 1.0, %v1716
    %v1718 = vrcp.pop %v1708
    %v1719 = vmul.f32 1.0, %v1718
    %v1720 = vrcp.pop %v1709
    %v1721 = vmul.f32 1.0, %v1720
    %v1722 = vrcp.pop %v1710
    %v1723 = vmul.f32 1.0, %v1722
    %v1724 = vrcp.pop %v1711
    %v1725 = vmul.f32 1.0, %v1724
    %v1726 = vpack.c.bf16 %v1713, %v1713
    %v1727 = vpack.c.bf16 %v1715, %v1715
    %v1728 = vpack.c.bf16 %v1717, %v1717
    %v1729 = vpack.c.bf16 %v1719, %v1719
    %v1730 = vpack.c.bf16 %v1721, %v1721
    %v1731 = vpack.c.bf16 %v1723, %v1723
    %v1732 = vpack.c.bf16 %v1725, %v1725
    %v1740 = vunpack.c.l.b16 %v1726
    %v1741 = vunpack.c.l.b16 %v1727
    %v1742 = vunpack.c.l.b16 %v1728
    %v1743 = vunpack.c.l.b16 %v1729
    %v1744 = vunpack.c.l.b16 %v1730
    %v1745 = vunpack.c.l.b16 %v1731
    %v1746 = vunpack.c.l.b16 %v1732
    %v1747 = vpack.c.b16 %v1741, %v1740
    %v1748 = vpack.c.b16 %v1743, %v1742
    %v1749 = vpack.c.b16 %v1745, %v1744
    %v1750 = vpack.c.b16 %v1746, %v1746
    %1755 = vst [vmem:[#allocation2] sm:$0xff] %v1747
    %1756 = vst [vmem:[#allocation2 + $0x8] sm:$0xff] %v1748
    %1757 = vst [vmem:[#allocation2 + $0x10] sm:$0xff] %v1749
    %vm1758 = vcmask 125952
    %1759 = vst.msk [vmem:[#allocation2 + $0x18] sm:$0xf] %vm1758, %v1750
    // Predicated region
    $region70: #{cvae_forward.1} parent=1 // pred_check
      _
    $region71: #{cvae_forward.1} parent=1 // pred_check_branch
      %1761 = sbr.rel (0) target = $region73
    $region72: #{cvae_forward.1} parent=1 // pred_region
      %s1763 = ssub.s32 448, 448
      %1764 = vsyncadd [#allocation3], %s1763
      %s1766 = sshll.u32 [#allocation2], 4
      %s1767 = int_to_ptr.vmem [resolvable:$true] %s1766
      %1769 = dma.vmem_to_hbm [thread:$0]  %s1767, 448, %s17, [#allocation3]
    $region73: #{cvae_forward.1} parent=1 // pred_fallthru
      _
    // Predicated region
    $region74: #{cvae_forward.1} parent=1 // pred_check
      _
    $region75: #{cvae_forward.1} parent=1 // pred_check_branch
      %1771 = sbr.rel (0) target = $region77
    $region76: #{cvae_forward.1} parent=1 // pred_region
      _
    $region77: #{cvae_forward.1} parent=1 // pred_fallthru
      _
    // Predicated region
    $region78: #{cvae_forward.1} parent=1 // pred_check
      _
    $region79: #{cvae_forward.1} parent=1 // pred_check_branch
      %1773 = sbr.rel (0) target = $region81
    $region80: #{cvae_forward.1} parent=1 // pred_region
      %1774 = dma.done [#allocation3], 448
    $region81: #{cvae_forward.1} parent=1 // pred_fallthru
      _
    // Predicated region
    $region82: #{cvae_forward.1} parent=1 // pred_check
      _
    $region83: #{cvae_forward.1} parent=1 // pred_check_branch
      %1776 = sbr.rel (0) target = $region85
    $region84: #{cvae_forward.1} parent=1 // pred_region
      _
    $region85: #{cvae_forward.1} parent=1 // pred_fallthru
      _
    %1777 = vsyncpa [#allocation3], 1

</llo_original>
